<compile_context>
chip_gen: v6e
topology: v6e:2x2x1
jax: 0.10.0
libtpu: 0.0.40
codegen_flags: <defaults>
</compile_context>

<pallas_src>
import functools

import jax
import jax.numpy as jnp
from jax import lax
from jax.experimental import pallas as pl
from jax.experimental.pallas import tpu as pltpu


def _to_pair(v):
    return (v, v) if isinstance(v, int) else tuple(v)


def _round_up(x, m):
    return ((x + m - 1) // m) * m


_PAD_MODES = {"zeros": "constant", "reflect": "reflect",
              "replicate": "edge", "circular": "wrap"}


# --------------------------------------------------------------------------------------
# Fused-tap kernel (stride == 1): conv as sum over kh*kw lane-shifted matmuls.
# --------------------------------------------------------------------------------------
def _fused_tap_kernel(x_ref, w_ref, cb_ref, o_ref, acc_ref, *, taps, wrow, l_out):
    # Per grid point (g, n, ct):
    #   x_ref  : (1, 1, Ct, L_in)        flat padded input rows for this channel tile
    #   w_ref  : (1, 1, kh*kw, Go, Ct)   per-tap weight slices (native jnp.dot layout)
    #   cb_ref : (1, 1, Go, 1)           fused context + bias for (n, g)  (f32)
    #   o_ref  : (1, 1, Go, L_out)       lane-dense output slab (valid cols sliced on host)
    #   acc_ref: (Go, L_out) f32         accumulator across the channel-tile axis
    ct = pl.program_id(2)

    @pl.when(ct == 0)
    def _():
        acc_ref[...] = jnp.zeros_like(acc_ref)

    acc = acc_ref[...]
    for t, (u, v) in enumerate(taps):
        off = u * wrow + v                              # static flat shift for tap (u, v)
        xs = x_ref[0, 0, :, off:off + l_out]            # (Ct, L_out) in-VMEM shifted slice
        acc = acc + jnp.dot(w_ref[0, 0, t], xs,
                            preferred_element_type=jnp.float32)
    acc_ref[...] = acc

    @pl.when(ct == pl.num_programs(2) - 1)
    def _():
        # NOTE: columns >= out_w of each output row are garbage (+ ctx_bias) and are
        # sliced off on the host; never expose the padded slab directly.
        o_ref[0, 0] = (acc_ref[...] + cb_ref[0, 0]).astype(o_ref.dtype)


def _fused_path(x, ctx_bias, weight, *, ph, pw, groups, pad_mode, compute_dtype):
    N, C, H, W = x.shape
    Co, Cg, kh, kw = weight.shape
    Go = Co // groups

    x_p = jnp.pad(x, ((0, 0), (0, 0), (ph, ph), (pw, pw)), mode=pad_mode)
    Hp, Wp = x_p.shape[2], x_p.shape[3]
    out_h, out_w = Hp - kh + 1, Wp - kw + 1
    L_out = out_h * Wp
    extra = 1 if kw > 1 else 0                 # extra zero row so the last tap slice is in-bounds
    L_in = (Hp + extra) * Wp

    # Channel-tile size: bound the double-buffered input block (~8 MiB per buffer).
    cd_bytes = jnp.dtype(compute_dtype).itemsize
    ct_fit = max(1, (8 << 20) // (L_in * cd_bytes))
    if ct_fit >= Cg:
        Ct, Cg_pad = Cg, Cg
    else:
        Ct = max(8, (ct_fit // 8) * 8)
        Cg_pad = _round_up(Cg, Ct)
    n_ct = Cg_pad // Ct
    Go_pad = _round_up(Go, 8)

    # Flat padded input (N, G, Cg_pad, L_in) in compute dtype (single 1x copy, no im2col).
    xg = x_p.reshape(N, groups, Cg, Hp, Wp)
    xg = jnp.pad(xg, ((0, 0), (0, 0), (0, Cg_pad - Cg), (0, extra), (0, 0)))
    xg = xg.reshape(N, groups, Cg_pad, L_in).astype(compute_dtype)

    # Weight -> (G, n_ct, kh*kw, Go_pad, Ct): per-tap (Go, Ct) slices, native jnp.dot layout
    # (contraction on LHS lanes / RHS sublanes -> no per-step weight transpose expected).
    wg = weight.reshape(groups, Go, Cg, kh, kw)
    wg = jnp.pad(wg, ((0, 0), (0, Go_pad - Go), (0, Cg_pad - Cg), (0, 0), (0, 0)))
    wg = wg.transpose(0, 3, 4, 1, 2)                              # (G, kh, kw, Go_pad, Cg_pad)
    wg = wg.reshape(groups, kh * kw, Go_pad, n_ct, Ct)
    wg = wg.transpose(0, 3, 1, 2, 4).astype(compute_dtype)        # (G, n_ct, kh*kw, Go_pad, Ct)

    cb = ctx_bias.reshape(N, groups, Go)
    cb = jnp.pad(cb, ((0, 0), (0, 0), (0, Go_pad - Go))).reshape(N, groups, Go_pad, 1)

    io_bytes = jnp.dtype(x.dtype).itemsize
    needed = (2 * Ct * L_in * cd_bytes
              + 2 * kh * kw * Ct * Go_pad * cd_bytes
              + 2 * Go_pad * 4
              + 2 * Go_pad * L_out * io_bytes
              + Go_pad * L_out * 4)
    vmem_limit = int(min(max(needed + (8 << 20), 32 << 20), 56 << 20))

    taps = tuple((u, v) for u in range(kh) for v in range(kw))
    kernel = functools.partial(_fused_tap_kernel, taps=taps, wrow=Wp, l_out=L_out)

    # TODO(synk): for very large feature maps the per-(n,g) spatial slab should also be
    # row-tiled with a halo (manual DMA); here only the channel axis is tiled.
    out = pl.pallas_call(
        kernel,
        out_shape=jax.ShapeDtypeStruct((N, groups, Go_pad, L_out), x.dtype),
        grid=(groups, N, n_ct),                 # group outermost -> weight/bias stay resident
        in_specs=[
            pl.BlockSpec((1, 1, Ct, L_in), lambda g, n, ct: (n, g, ct, 0)),
            pl.BlockSpec((1, 1, kh * kw, Go_pad, Ct), lambda g, n, ct: (g, ct, 0, 0, 0)),
            pl.BlockSpec((1, 1, Go_pad, 1), lambda g, n, ct: (n, g, 0, 0)),
        ],
        out_specs=pl.BlockSpec((1, 1, Go_pad, L_out), lambda g, n, ct: (n, g, 0, 0)),
        scratch_shapes=[pltpu.VMEM((Go_pad, L_out), jnp.float32)],
        compiler_params=pltpu.CompilerParams(
            dimension_semantics=("parallel", "parallel", "arbitrary"),
            vmem_limit_bytes=vmem_limit),
    )(xg, wg, cb)

    # Drop Go padding and the invalid right-edge columns, back to NCHW (group-major channels).
    out = out.reshape(N, groups, Go_pad, out_h, Wp)[:, :, :Go, :, :out_w]
    return out.reshape(N, Co, out_h, out_w)


# --------------------------------------------------------------------------------------
# Fallback kernel (stride > 1): host im2col + lane-dense matmul (v2 path).
# --------------------------------------------------------------------------------------
def _im2col_kernel(patch_ref, w_ref, cb_ref, o_ref):
    acc = jnp.dot(w_ref[0], patch_ref[0, 0], preferred_element_type=jnp.float32)
    o_ref[0, 0] = (acc + cb_ref[0, 0]).astype(o_ref.dtype)


def _im2col_path(x, ctx_bias, weight, *, sh, sw, ph, pw, groups, pad_mode,
                 compute_dtype, p_tile):
    N, C, H, W = x.shape
    Co, Cg, kh, kw = weight.shape
    Go = Co // groups

    x_p = jnp.pad(x, ((0, 0), (0, 0), (ph, ph), (pw, pw)), mode=pad_mode)
    Hp, Wp = x_p.shape[2], x_p.shape[3]
    out_h = (Hp - kh) // sh + 1
    out_w = (Wp - kw) // sw + 1
    P = out_h * out_w
    Kp = Cg * kh * kw

    # TODO(synk): strided convs still materialize the kh*kw-expanded im2col tensor in HBM;
    # the fused flat-shift trick only covers stride == 1.
    cols = []
    for u in range(kh):
        for v in range(kw):
            cols.append(x_p[:, :, u:u + sh * out_h:sh, v:v + sw * out_w:sw])
    patches = jnp.stack(cols, axis=2).reshape(N, groups, Kp, P)

    LANE = 128
    Pt = _round_up(min(p_tile, _round_up(P, LANE)), LANE)
    P_pad = _round_up(P, Pt)
    num_pt = P_pad // Pt
    if P_pad != P:
        patches = jnp.pad(patches, ((0, 0), (0, 0), (0, 0), (0, P_pad - P)))
    patches = patches.astype(compute_dtype)

    cb = ctx_bias.reshape(N, groups, Go, 1)
    w_g = weight.reshape(groups, Go, Kp).astype(compute_dtype)

    cd = jnp.dtype(compute_dtype).itemsize
    io = jnp.dtype(x.dtype).itemsize
    needed = 2 * Kp * Pt * cd + 2 * Go * Kp * cd + 2 * Go * 4 + 2 * Go * Pt * io
    vmem_limit = int(min(max(needed + (8 << 20), 32 << 20), 56 << 20))

    out = pl.pallas_call(
        _im2col_kernel,
        out_shape=jax.ShapeDtypeStruct((N, groups, Go, P_pad), x.dtype),
        grid=(groups, N, num_pt),
        in_specs=[
            pl.BlockSpec((1, 1, Kp, Pt), lambda g, n, p: (n, g, 0, p)),
            pl.BlockSpec((1, Go, Kp), lambda g, n, p: (g, 0, 0)),
            pl.BlockSpec((1, 1, Go, 1), lambda g, n, p: (n, g, 0, 0)),
        ],
        out_specs=pl.BlockSpec((1, 1, Go, Pt), lambda g, n, p: (n, g, 0, p)),
        compiler_params=pltpu.CompilerParams(
            dimension_semantics=("parallel", "parallel", "parallel"),
            vmem_limit_bytes=vmem_limit),
    )(patches, w_g, cb)

    # Padded spatial columns contain ctx_bias, not zeros: always slice before reshape.
    return out[..., :P].reshape(N, Co, out_h, out_w)


# --------------------------------------------------------------------------------------
# Public wrapper
# --------------------------------------------------------------------------------------
def _ctx_bias(c, c_weight, bias, N, Co):
    cb = jnp.zeros((N, Co), dtype=jnp.float32)
    if c is not None and c_weight is not None:
        cb = cb + jnp.dot(c.astype(jnp.float32), c_weight.astype(jnp.float32).T)
    if bias is not None:
        cb = cb + bias.astype(jnp.float32)[None, :]
    return cb


def contextual_conv2d(x, c, weight, bias, c_weight, *, stride=1, padding=0,
                      dilation=1, groups=1, padding_mode="zeros",
                      compute_dtype=jnp.bfloat16, p_tile=512):
    """Pallas implementation of ContextualConv2d.forward (x NCHW, c (N, c_dim))."""
    N, C, H, W = x.shape
    Co, Cg, kh, kw = weight.shape
    sh, sw = _to_pair(stride)
    ph, pw = _to_pair(padding)
    dh, dw = _to_pair(dilation)
    # TODO(synk): dilation > 1 makes the reference PyTorch unfold path shape-inconsistent
    # with its own weight reshape; only dilation == 1 is supported (as in the reference).
    assert (dh, dw) == (1, 1), "only dilation=1 is supported"
    assert Co % groups == 0 and C % groups == 0 and C // groups == Cg

    pad_mode = _PAD_MODES[padding_mode]
    ctx_bias = _ctx_bias(c, c_weight, bias, N, Co)     # one dense GEMM + bias on the host

    if (sh, sw) == (1, 1):
        return _fused_path(x, ctx_bias, weight, ph=ph, pw=pw, groups=groups,
                           pad_mode=pad_mode, compute_dtype=compute_dtype)
    return _im2col_path(x, ctx_bias, weight, sh=sh, sw=sw, ph=ph, pw=pw, groups=groups,
                        pad_mode=pad_mode, compute_dtype=compute_dtype, p_tile=p_tile)


# --------------------------------------------------------------------------------------
# Reference + self-test
# --------------------------------------------------------------------------------------
def _reference(x, c, weight, bias, c_weight, *, stride, padding, groups, compute_dtype):
    sh, sw = _to_pair(stride)
    ph, pw = _to_pair(padding)
    xr = x.astype(compute_dtype).astype(jnp.float32)
    wr = weight.astype(compute_dtype).astype(jnp.float32)
    conv = lax.conv_general_dilated(
        xr, wr, window_strides=(sh, sw), padding=((ph, ph), (pw, pw)),
        dimension_numbers=("NCHW", "OIHW", "NCHW"), feature_group_count=groups,
        precision=lax.Precision.HIGHEST)
    cb = _ctx_bias(c, c_weight, bias, x.shape[0], weight.shape[0])
    return conv + cb[:, :, None, None]


if __name__ == "__main__":
    N, Cin, Cout, H, W = 2, 4, 8, 16, 16
    kh, kw = 3, 3
    c_dim = 8

    key = jax.random.PRNGKey(0)
    kx, kc, kw1, kw2, kb, kcw = jax.random.split(key, 6)
    x = jax.random.normal(kx, (N, Cin, H, W), dtype=jnp.float32)
    c = jax.random.normal(kc, (N, c_dim), dtype=jnp.float32)
    bias = jax.random.normal(kb, (Cout,), dtype=jnp.float32)
    c_weight = jax.random.normal(kcw, (Cout, c_dim), dtype=jnp.float32)

    # Case 1: stride=1, groups=2 -> fused-tap kernel (no host im2col).
    weight1 = jax.random.normal(kw1, (Cout, Cin // 2, kh, kw), dtype=jnp.float32)
    out1 = contextual_conv2d(x, c, weight1, bias, c_weight,
                             stride=1, padding=1, groups=2)
    out1 = jax.block_until_ready(out1)
    ref1 = _reference(x, c, weight1, bias, c_weight, stride=1, padding=1, groups=2,
                      compute_dtype=jnp.bfloat16)
    assert out1.shape == (N, Cout, H, W)
    assert jnp.allclose(out1, ref1, atol=2e-3, rtol=2e-3), \
        f"fused path max abs err {jnp.max(jnp.abs(out1 - ref1))}"

    # Case 2: stride=2, groups=1 -> host-im2col fallback kernel.
    weight2 = jax.random.normal(kw2, (Cout, Cin, kh, kw), dtype=jnp.float32)
    out2 = contextual_conv2d(x, c, weight2, bias, c_weight,
                             stride=2, padding=1, groups=1)
    out2 = jax.block_until_ready(out2)
    ref2 = _reference(x, c, weight2, bias, c_weight, stride=2, padding=1, groups=1,
                      compute_dtype=jnp.bfloat16)
    assert out2.shape == (N, Cout, 8, 8)
    assert jnp.allclose(out2, ref2, atol=2e-3, rtol=2e-3), \
        f"im2col path max abs err {jnp.max(jnp.abs(out2 - ref2))}"

    print("KERNEL_OK")
</pallas_src>

<mosaic_0001>
module attributes {stable_mosaic.version = 11 : i64} {
  func.func @_fused_tap_kernel(%arg0: i32, %arg1: i32, %arg2: i32, %arg3: memref<1x1x2x342xbf16, #tpu.memory_space<vmem>>, %arg4: memref<1x1x9x8x2xbf16, #tpu.memory_space<vmem>>, %arg5: memref<1x1x8x1xf32, #tpu.memory_space<vmem>>, %arg6: memref<1x1x8x288xf32, #tpu.memory_space<vmem>>, %arg7: memref<8x288xf32, #tpu.memory_space<vmem>>) attributes {dimension_semantics = [#tpu.dimension_semantics<parallel>, #tpu.dimension_semantics<parallel>, #tpu.dimension_semantics<arbitrary>], iteration_bounds = array<i64: 2, 2, 1>, scalar_prefetch = 0 : i64, scratch_operands = 1 : i64, tpu.core_type = #tpu.core_type<tc>, window_params = [{transform_indices = @transform_0, window_bounds = array<i64: 1, 1, 2, 342>}, {transform_indices = @transform_1, window_bounds = array<i64: 1, 1, 9, 8, 2>}, {transform_indices = @transform_2, window_bounds = array<i64: 1, 1, 8, 1>}, {transform_indices = @transform_3, window_bounds = array<i64: 1, 1, 8, 288>}]} {
    %c0_i32 = arith.constant 0 : i32
    %0 = arith.cmpi eq, %arg2, %c0_i32 : i32
    %1 = arith.extui %0 : i1 to i32
    %c0_i32_0 = arith.constant 0 : i32
    %2 = arith.cmpi ne, %1, %c0_i32_0 : i32
    scf.if %2 {
      %cst_81 = arith.constant 0.000000e+00 : f32
      %62 = vector.broadcast %cst_81 : f32 to vector<8x288xf32>
      %c0_82 = arith.constant 0 : index
      %c0_83 = arith.constant 0 : index
      %63 = vector.load %arg7[%c0_82, %c0_83] : memref<8x288xf32, #tpu.memory_space<vmem>>, vector<8x288xf32>
      tpu.vector_store %arg7[%c0_82, %c0_83], %62 {strides = array<i32>} : memref<8x288xf32, #tpu.memory_space<vmem>>, vector<8x288xf32>,
    } else {
    }
    %c0 = arith.constant 0 : index
    %c0_1 = arith.constant 0 : index
    %3 = vector.load %arg7[%c0, %c0_1] : memref<8x288xf32, #tpu.memory_space<vmem>>, vector<8x288xf32>
    %c0_2 = arith.constant 0 : index
    %c0_3 = arith.constant 0 : index
    %c0_4 = arith.constant 0 : index
    %c0_5 = arith.constant 0 : index
    %4 = vector.load %arg3[%c0_2, %c0_3, %c0_4, %c0_5] : memref<1x1x2x342xbf16, #tpu.memory_space<vmem>>, vector<1x1x2x288xbf16>
    %5 = vector.shape_cast %4 : vector<1x1x2x288xbf16> to vector<2x288xbf16>
    %c0_6 = arith.constant 0 : index
    %c0_7 = arith.constant 0 : index
    %c0_8 = arith.constant 0 : index
    %c0_9 = arith.constant 0 : index
    %c0_10 = arith.constant 0 : index
    %6 = vector.load %arg4[%c0_6, %c0_7, %c0_8, %c0_9, %c0_10] : memref<1x1x9x8x2xbf16, #tpu.memory_space<vmem>>, vector<1x1x1x8x2xbf16>
    %7 = vector.shape_cast %6 : vector<1x1x1x8x2xbf16> to vector<8x2xbf16>
    %cst = arith.constant dense<0.000000e+00> : vector<8x288xf32>
    %8 = tpu.matmul %7, %5, %cst {dimension_numbers = #tpu.dot_dimension_numbers<[1], [0], [0], [1], [0, 0, 1, 1], [], []>} : vector<8x2xbf16>, vector<2x288xbf16>, vector<8x288xf32> -> vector<8x288xf32>
    %9 = arith.addf %3, %8 : vector<8x288xf32>
    %c0_11 = arith.constant 0 : index
    %c0_12 = arith.constant 0 : index
    %c0_13 = arith.constant 0 : index
    %c1 = arith.constant 1 : index
    %10 = vector.load %arg3[%c0_11, %c0_12, %c0_13, %c1] : memref<1x1x2x342xbf16, #tpu.memory_space<vmem>>, vector<1x1x2x288xbf16>
    %11 = vector.shape_cast %10 : vector<1x1x2x288xbf16> to vector<2x288xbf16>
    %c0_14 = arith.constant 0 : index
    %c0_15 = arith.constant 0 : index
    %c1_16 = arith.constant 1 : index
    %c0_17 = arith.constant 0 : index
    %c0_18 = arith.constant 0 : index
    %12 = vector.load %arg4[%c0_14, %c0_15, %c1_16, %c0_17, %c0_18] : memref<1x1x9x8x2xbf16, #tpu.memory_space<vmem>>, vector<1x1x1x8x2xbf16>
    %13 = vector.shape_cast %12 : vector<1x1x1x8x2xbf16> to vector<8x2xbf16>
    %cst_19 = arith.constant dense<0.000000e+00> : vector<8x288xf32>
    %14 = tpu.matmul %13, %11, %cst_19 {dimension_numbers = #tpu.dot_dimension_numbers<[1], [0], [0], [1], [0, 0, 1, 1], [], []>} : vector<8x2xbf16>, vector<2x288xbf16>, vector<8x288xf32> -> vector<8x288xf32>
    %15 = arith.addf %9, %14 : vector<8x288xf32>
    %c0_20 = arith.constant 0 : index
    %c0_21 = arith.constant 0 : index
    %c0_22 = arith.constant 0 : index
    %c2 = arith.constant 2 : index
    %16 = vector.load %arg3[%c0_20, %c0_21, %c0_22, %c2] : memref<1x1x2x342xbf16, #tpu.memory_space<vmem>>, vector<1x1x2x288xbf16>
    %17 = vector.shape_cast %16 : vector<1x1x2x288xbf16> to vector<2x288xbf16>
    %c0_23 = arith.constant 0 : index
    %c0_24 = arith.constant 0 : index
    %c2_25 = arith.constant 2 : index
    %c0_26 = arith.constant 0 : index
    %c0_27 = arith.constant 0 : index
    %18 = vector.load %arg4[%c0_23, %c0_24, %c2_25, %c0_26, %c0_27] : memref<1x1x9x8x2xbf16, #tpu.memory_space<vmem>>, vector<1x1x1x8x2xbf16>
    %19 = vector.shape_cast %18 : vector<1x1x1x8x2xbf16> to vector<8x2xbf16>
    %cst_28 = arith.constant dense<0.000000e+00> : vector<8x288xf32>
    %20 = tpu.matmul %19, %17, %cst_28 {dimension_numbers = #tpu.dot_dimension_numbers<[1], [0], [0], [1], [0, 0, 1, 1], [], []>} : vector<8x2xbf16>, vector<2x288xbf16>, vector<8x288xf32> -> vector<8x288xf32>
    %21 = arith.addf %15, %20 : vector<8x288xf32>
    %c0_29 = arith.constant 0 : index
    %c0_30 = arith.constant 0 : index
    %c0_31 = arith.constant 0 : index
    %c18 = arith.constant 18 : index
    %22 = vector.load %arg3[%c0_29, %c0_30, %c0_31, %c18] : memref<1x1x2x342xbf16, #tpu.memory_space<vmem>>, vector<1x1x2x288xbf16>
    %23 = vector.shape_cast %22 : vector<1x1x2x288xbf16> to vector<2x288xbf16>
    %c0_32 = arith.constant 0 : index
    %c0_33 = arith.constant 0 : index
    %c3 = arith.constant 3 : index
    %c0_34 = arith.constant 0 : index
    %c0_35 = arith.constant 0 : index
    %24 = vector.load %arg4[%c0_32, %c0_33, %c3, %c0_34, %c0_35] : memref<1x1x9x8x2xbf16, #tpu.memory_space<vmem>>, vector<1x1x1x8x2xbf16>
    %25 = vector.shape_cast %24 : vector<1x1x1x8x2xbf16> to vector<8x2xbf16>
    %cst_36 = arith.constant dense<0.000000e+00> : vector<8x288xf32>
    %26 = tpu.matmul %25, %23, %cst_36 {dimension_numbers = #tpu.dot_dimension_numbers<[1], [0], [0], [1], [0, 0, 1, 1], [], []>} : vector<8x2xbf16>, vector<2x288xbf16>, vector<8x288xf32> -> vector<8x288xf32>
    %27 = arith.addf %21, %26 : vector<8x288xf32>
    %c0_37 = arith.constant 0 : index
    %c0_38 = arith.constant 0 : index
    %c0_39 = arith.constant 0 : index
    %c19 = arith.constant 19 : index
    %28 = vector.load %arg3[%c0_37, %c0_38, %c0_39, %c19] : memref<1x1x2x342xbf16, #tpu.memory_space<vmem>>, vector<1x1x2x288xbf16>
    %29 = vector.shape_cast %28 : vector<1x1x2x288xbf16> to vector<2x288xbf16>
    %c0_40 = arith.constant 0 : index
    %c0_41 = arith.constant 0 : index
    %c4 = arith.constant 4 : index
    %c0_42 = arith.constant 0 : index
    %c0_43 = arith.constant 0 : index
    %30 = vector.load %arg4[%c0_40, %c0_41, %c4, %c0_42, %c0_43] : memref<1x1x9x8x2xbf16, #tpu.memory_space<vmem>>, vector<1x1x1x8x2xbf16>
    %31 = vector.shape_cast %30 : vector<1x1x1x8x2xbf16> to vector<8x2xbf16>
    %cst_44 = arith.constant dense<0.000000e+00> : vector<8x288xf32>
    %32 = tpu.matmul %31, %29, %cst_44 {dimension_numbers = #tpu.dot_dimension_numbers<[1], [0], [0], [1], [0, 0, 1, 1], [], []>} : vector<8x2xbf16>, vector<2x288xbf16>, vector<8x288xf32> -> vector<8x288xf32>
    %33 = arith.addf %27, %32 : vector<8x288xf32>
    %c0_45 = arith.constant 0 : index
    %c0_46 = arith.constant 0 : index
    %c0_47 = arith.constant 0 : index
    %c20 = arith.constant 20 : index
    %34 = vector.load %arg3[%c0_45, %c0_46, %c0_47, %c20] : memref<1x1x2x342xbf16, #tpu.memory_space<vmem>>, vector<1x1x2x288xbf16>
    %35 = vector.shape_cast %34 : vector<1x1x2x288xbf16> to vector<2x288xbf16>
    %c0_48 = arith.constant 0 : index
    %c0_49 = arith.constant 0 : index
    %c5 = arith.constant 5 : index
    %c0_50 = arith.constant 0 : index
    %c0_51 = arith.constant 0 : index
    %36 = vector.load %arg4[%c0_48, %c0_49, %c5, %c0_50, %c0_51] : memref<1x1x9x8x2xbf16, #tpu.memory_space<vmem>>, vector<1x1x1x8x2xbf16>
    %37 = vector.shape_cast %36 : vector<1x1x1x8x2xbf16> to vector<8x2xbf16>
    %cst_52 = arith.constant dense<0.000000e+00> : vector<8x288xf32>
    %38 = tpu.matmul %37, %35, %cst_52 {dimension_numbers = #tpu.dot_dimension_numbers<[1], [0], [0], [1], [0, 0, 1, 1], [], []>} : vector<8x2xbf16>, vector<2x288xbf16>, vector<8x288xf32> -> vector<8x288xf32>
    %39 = arith.addf %33, %38 : vector<8x288xf32>
    %c0_53 = arith.constant 0 : index
    %c0_54 = arith.constant 0 : index
    %c0_55 = arith.constant 0 : index
    %c36 = arith.constant 36 : index
    %40 = vector.load %arg3[%c0_53, %c0_54, %c0_55, %c36] : memref<1x1x2x342xbf16, #tpu.memory_space<vmem>>, vector<1x1x2x288xbf16>
    %41 = vector.shape_cast %40 : vector<1x1x2x288xbf16> to vector<2x288xbf16>
    %c0_56 = arith.constant 0 : index
    %c0_57 = arith.constant 0 : index
    %c6 = arith.constant 6 : index
    %c0_58 = arith.constant 0 : index
    %c0_59 = arith.constant 0 : index
    %42 = vector.load %arg4[%c0_56, %c0_57, %c6, %c0_58, %c0_59] : memref<1x1x9x8x2xbf16, #tpu.memory_space<vmem>>, vector<1x1x1x8x2xbf16>
    %43 = vector.shape_cast %42 : vector<1x1x1x8x2xbf16> to vector<8x2xbf16>
    %cst_60 = arith.constant dense<0.000000e+00> : vector<8x288xf32>
    %44 = tpu.matmul %43, %41, %cst_60 {dimension_numbers = #tpu.dot_dimension_numbers<[1], [0], [0], [1], [0, 0, 1, 1], [], []>} : vector<8x2xbf16>, vector<2x288xbf16>, vector<8x288xf32> -> vector<8x288xf32>
    %45 = arith.addf %39, %44 : vector<8x288xf32>
    %c0_61 = arith.constant 0 : index
    %c0_62 = arith.constant 0 : index
    %c0_63 = arith.constant 0 : index
    %c37 = arith.constant 37 : index
    %46 = vector.load %arg3[%c0_61, %c0_62, %c0_63, %c37] : memref<1x1x2x342xbf16, #tpu.memory_space<vmem>>, vector<1x1x2x288xbf16>
    %47 = vector.shape_cast %46 : vector<1x1x2x288xbf16> to vector<2x288xbf16>
    %c0_64 = arith.constant 0 : index
    %c0_65 = arith.constant 0 : index
    %c7 = arith.constant 7 : index
    %c0_66 = arith.constant 0 : index
    %c0_67 = arith.constant 0 : index
    %48 = vector.load %arg4[%c0_64, %c0_65, %c7, %c0_66, %c0_67] : memref<1x1x9x8x2xbf16, #tpu.memory_space<vmem>>, vector<1x1x1x8x2xbf16>
    %49 = vector.shape_cast %48 : vector<1x1x1x8x2xbf16> to vector<8x2xbf16>
    %cst_68 = arith.constant dense<0.000000e+00> : vector<8x288xf32>
    %50 = tpu.matmul %49, %47, %cst_68 {dimension_numbers = #tpu.dot_dimension_numbers<[1], [0], [0], [1], [0, 0, 1, 1], [], []>} : vector<8x2xbf16>, vector<2x288xbf16>, vector<8x288xf32> -> vector<8x288xf32>
    %51 = arith.addf %45, %50 : vector<8x288xf32>
    %c0_69 = arith.constant 0 : index
    %c0_70 = arith.constant 0 : index
    %c0_71 = arith.constant 0 : index
    %c38 = arith.constant 38 : index
    %52 = vector.load %arg3[%c0_69, %c0_70, %c0_71, %c38] : memref<1x1x2x342xbf16, #tpu.memory_space<vmem>>, vector<1x1x2x288xbf16>
    %53 = vector.shape_cast %52 : vector<1x1x2x288xbf16> to vector<2x288xbf16>
    %c0_72 = arith.constant 0 : index
    %c0_73 = arith.constant 0 : index
    %c8 = arith.constant 8 : index
    %c0_74 = arith.constant 0 : index
    %c0_75 = arith.constant 0 : index
    %54 = vector.load %arg4[%c0_72, %c0_73, %c8, %c0_74, %c0_75] : memref<1x1x9x8x2xbf16, #tpu.memory_space<vmem>>, vector<1x1x1x8x2xbf16>
    %55 = vector.shape_cast %54 : vector<1x1x1x8x2xbf16> to vector<8x2xbf16>
    %cst_76 = arith.constant dense<0.000000e+00> : vector<8x288xf32>
    %56 = tpu.matmul %55, %53, %cst_76 {dimension_numbers = #tpu.dot_dimension_numbers<[1], [0], [0], [1], [0, 0, 1, 1], [], []>} : vector<8x2xbf16>, vector<2x288xbf16>, vector<8x288xf32> -> vector<8x288xf32>
    %57 = arith.addf %51, %56 : vector<8x288xf32>
    %c0_77 = arith.constant 0 : index
    %c0_78 = arith.constant 0 : index
    %58 = vector.load %arg7[%c0_77, %c0_78] : memref<8x288xf32, #tpu.memory_space<vmem>>, vector<8x288xf32>
    tpu.vector_store %arg7[%c0_77, %c0_78], %57 {strides = array<i32>} : memref<8x288xf32, #tpu.memory_space<vmem>>, vector<8x288xf32>,
    %c0_i32_79 = arith.constant 0 : i32
    %59 = arith.cmpi eq, %arg2, %c0_i32_79 : i32
    %60 = arith.extui %59 : i1 to i32
    %c0_i32_80 = arith.constant 0 : i32
    %61 = arith.cmpi ne, %60, %c0_i32_80 : i32
    scf.if %61 {
      %c0_81 = arith.constant 0 : index
      %c0_82 = arith.constant 0 : index
      %62 = vector.load %arg7[%c0_81, %c0_82] : memref<8x288xf32, #tpu.memory_space<vmem>>, vector<8x288xf32>
      %c0_83 = arith.constant 0 : index
      %c0_84 = arith.constant 0 : index
      %c0_85 = arith.constant 0 : index
      %c0_86 = arith.constant 0 : index
      %63 = vector.load %arg5[%c0_83, %c0_84, %c0_85, %c0_86] : memref<1x1x8x1xf32, #tpu.memory_space<vmem>>, vector<1x1x8x1xf32>
      %64 = vector.shape_cast %63 : vector<1x1x8x1xf32> to vector<8x1xf32>
      %65 = vector.broadcast %64 : vector<8x1xf32> to vector<8x288xf32>
      %66 = arith.addf %62, %65 : vector<8x288xf32>
      %c0_87 = arith.constant 0 : index
      %c0_88 = arith.constant 0 : index
      %c0_89 = arith.constant 0 : index
      %c0_90 = arith.constant 0 : index
      %67 = vector.load %arg6[%c0_87, %c0_88, %c0_89, %c0_90] : memref<1x1x8x288xf32, #tpu.memory_space<vmem>>, vector<1x1x8x288xf32>
      %68 = vector.shape_cast %67 : vector<1x1x8x288xf32> to vector<8x288xf32>
      %69 = vector.shape_cast %66 : vector<8x288xf32> to vector<1x1x8x288xf32>
      tpu.vector_store %arg6[%c0_87, %c0_88, %c0_89, %c0_90], %69 {strides = array<i32>} : memref<1x1x8x288xf32, #tpu.memory_space<vmem>>, vector<1x1x8x288xf32>,
    } else {
    }
    return
  }
  func.func @transform_0(%arg0: i32, %arg1: i32, %arg2: i32) -> (i32, i32, i32, i32) {
    %c0_i32 = arith.constant 0 : i32
    %c0_i32_0 = arith.constant 0 : i32
    return %arg1, %arg0, %arg2, %c0_i32 : i32, i32, i32, i32
  }
  func.func @transform_1(%arg0: i32, %arg1: i32, %arg2: i32) -> (i32, i32, i32, i32, i32) {
    %c0_i32 = arith.constant 0 : i32
    %c0_i32_0 = arith.constant 0 : i32
    %c0_i32_1 = arith.constant 0 : i32
    %c0_i32_2 = arith.constant 0 : i32
    return %arg0, %arg2, %c0_i32, %c0_i32_0, %c0_i32_1 : i32, i32, i32, i32, i32
  }
  func.func @transform_2(%arg0: i32, %arg1: i32, %arg2: i32) -> (i32, i32, i32, i32) {
    %c0_i32 = arith.constant 0 : i32
    %c0_i32_0 = arith.constant 0 : i32
    %c0_i32_1 = arith.constant 0 : i32
    return %arg1, %arg0, %c0_i32, %c0_i32_0 : i32, i32, i32, i32
  }
  func.func @transform_3(%arg0: i32, %arg1: i32, %arg2: i32) -> (i32, i32, i32, i32) {
    %c0_i32 = arith.constant 0 : i32
    %c0_i32_0 = arith.constant 0 : i32
    %c0_i32_1 = arith.constant 0 : i32
    return %arg1, %arg0, %c0_i32, %c0_i32_0 : i32, i32, i32, i32
  }
}

</mosaic_0001>

<llo_original>
// kernel: tpu_custom_call.1
$region0: #{tpu_custom_call.1}
  #allocation0 [shape = 'u32[]', space=smem, size = 0x4, offset = 0x4, fixed_abs, tag = 'smem constant byte address 0x4 - core index']
  #allocation1 [shape = 'u32[144,128]{1,0:T(1,128)}', space=vmem, size = 0x12000, scoped, tag = 'internal scratch']
  #allocation2 [shape = 'f32[8,288]{1,0:T(8,128)}', space=vmem, size = 0x3000, scoped, tag = 'scratch operand']
  %s0 = inlined_call_operand.vmem [shape: bf16[2,2,2,342], index: 0, kind: input, shape index: {}]
  %s1 = inlined_call_operand.vmem [shape: bf16[2,1,9,8,2], index: 1, kind: input, shape index: {}]
  %s2 = inlined_call_operand.vmem [shape: f32[2,2,8,1], index: 2, kind: input, shape index: {}]
  %s3 = inlined_call_operand.hbm [shape: f32[2,2,8,288], index: 3, kind: output, shape index: {}]
  %s4 = sld [smem:[#allocation0]]
  $region53: #{tpu_custom_call.1} parent=0
    _
  %s6 = ssub.s32 1, %s4
  %s7 = scalar_select 0, %s6, %s4
  $region1: #{tpu_custom_call.1} parent=0
    #allocation3 [shape = 'u8[24576]{0}', space=vmem, size = 0x6000, scoped, tag = 'output window, operand 0']
    #allocation4 [shape = 's32[2]{0}', space=sflag, size = 0x8, scoped, tag = 'scoped memory for tpu_custom_call.1']
    %8 = vsyncpa [#allocation4], 0
    %s9 = scalar_lea.sflag [#allocation4], 1
    %10 = vsyncpa %s9, 0
    loop: start=0, step=1, limit=6
    $region2: #{tpu_custom_call.1} parent=1 // loop_pre_header
      _
    $region3: #{tpu_custom_call.1} parent=1 // loop_header
      %s12 = sphi 0, %s16
      %p13 = scmp.ge.s32.totalorder %s12, 6
      %s19 = sphi 0, %s38
      %s20 = sphi 0, %s34
      %s21 = sphi 0, %s30
      %s22 = sphi 0, %s19
      %s23 = sphi 0, %s20
      %s24 = sphi 0, %s21
      %s25 = sphi 0, %s22
      %s26 = sphi 0, %s23
      %s27 = sphi 0, %s24
      %s45 = sphi 0, %s47
      %s48 = sphi 0, %s45
      %s49 = sphi 0, %s48
      %s65 = sphi 0, %s49
      %s73 = sphi 0, %s75
      %s76 = sphi 0, %s73
      %s77 = sphi 0, %s76
      %s93 = sphi 0, %s77
      %s101 = sphi 0, %s103
      %s104 = sphi 0, %s101
      %s105 = sphi 0, %s104
      %s121 = sphi 0, %s105
      %s129 = sphi 0, %s131
      %s132 = sphi 0, %s129
      %s133 = sphi 0, %s132
      %s149 = sphi 0, %s133
    $region4: #{tpu_custom_call.1} parent=1 // loop_header_branch
      %15 = sbr.rel (%p13) target = $region8
    $region5: #{tpu_custom_call.1} parent=1 // loop_body
      %s17 = ssub.s32 %s12, 1
      %s18 = ssub.s32 %s12, 2
      %s28 = sadd.s32 1, %s21
      %p29 = scmp.ge.s32.totalorder %s28, 1
      %s30 = scalar_select %p29, 0, %s28
      %s31 = sadd.s32 1, %s20
      %s32 = scalar_select %p29, %s31, %s20
      %p33 = scmp.ge.s32.totalorder %s32, 2
      %s34 = scalar_select %p33, 0, %s32
      %s35 = sadd.s32 1, %s19
      %s36 = scalar_select %p33, %s35, %s19
      %p37 = scmp.ge.s32.totalorder %s36, 2
      %s38 = scalar_select %p37, 0, %s36
      %s39 = ssub.s32 %s20, %s34
      %s40 = ssub.s32 %s19, %s38
      %s41 = sor.u32 %s39, %s40
      %s42 = ssub.s32 %s21, %s30
      %s43 = sor.u32 %s41, %s42
      %p44 = scmp.eq.s32.totalorder %s43, 0
      %s46 = sadd.s32 %s45, 1
      %s47 = scalar_select %p44, %s45, %s46
      %p50 = pneg %p44
      %p51 = scmp.eq.s32.totalorder %s12, 3
      %p52 = por %p50, %p51
      %p53 = scmp.ne.s32.totalorder %s45, %s48
      %p54 = scmp.eq.s32.totalorder %s12, 0
      %p55 = por %p53, %p54
      %p56 = scmp.ne.s32.totalorder %s45, %s48
      %p57 = scmp.eq.s32.totalorder %s17, 3
      %p58 = por %p56, %p57
      %p59 = scmp.ne.s32.totalorder %s48, %s49
      %p60 = scmp.eq.s32.totalorder %s17, 0
      %p61 = por %p59, %p60
      %p62 = scmp.ne.s32.totalorder %s48, %s49
      %p63 = scmp.eq.s32.totalorder %s18, 3
      %p64 = por %p62, %p63
      %p66 = scmp.ne.s32.totalorder %s49, %s65
      %p67 = scmp.eq.s32.totalorder %s18, 0
      %p68 = por %p66, %p67
      %s69 = ssub.s32 %s19, %s38
      %s70 = ssub.s32 %s21, %s30
      %s71 = sor.u32 %s69, %s70
      %p72 = scmp.eq.s32.totalorder %s71, 0
      %s74 = sadd.s32 %s73, 1
      %s75 = scalar_select %p72, %s73, %s74
      %p78 = pneg %p72
      %p79 = scmp.eq.s32.totalorder %s12, 3
      %p80 = por %p78, %p79
      %p81 = scmp.ne.s32.totalorder %s73, %s76
      %p82 = scmp.eq.s32.totalorder %s12, 0
      %p83 = por %p81, %p82
      %p84 = scmp.ne.s32.totalorder %s73, %s76
      %p85 = scmp.eq.s32.totalorder %s17, 3
      %p86 = por %p84, %p85
      %p87 = scmp.ne.s32.totalorder %s76, %s77
      %p88 = scmp.eq.s32.totalorder %s17, 0
      %p89 = por %p87, %p88
      %p90 = scmp.ne.s32.totalorder %s76, %s77
      %p91 = scmp.eq.s32.totalorder %s18, 3
      %p92 = por %p90, %p91
      %p94 = scmp.ne.s32.totalorder %s77, %s93
      %p95 = scmp.eq.s32.totalorder %s18, 0
      %p96 = por %p94, %p95
      %s97 = ssub.s32 %s20, %s34
      %s98 = ssub.s32 %s19, %s38
      %s99 = sor.u32 %s97, %s98
      %p100 = scmp.eq.s32.totalorder %s99, 0
      %s102 = sadd.s32 %s101, 1
      %s103 = scalar_select %p100, %s101, %s102
      %p106 = pneg %p100
      %p107 = scmp.eq.s32.totalorder %s12, 3
      %p108 = por %p106, %p107
      %p109 = scmp.ne.s32.totalorder %s101, %s104
      %p110 = scmp.eq.s32.totalorder %s12, 0
      %p111 = por %p109, %p110
      %p112 = scmp.ne.s32.totalorder %s101, %s104
      %p113 = scmp.eq.s32.totalorder %s17, 3
      %p114 = por %p112, %p113
      %p115 = scmp.ne.s32.totalorder %s104, %s105
      %p116 = scmp.eq.s32.totalorder %s17, 0
      %p117 = por %p115, %p116
      %p118 = scmp.ne.s32.totalorder %s104, %s105
      %p119 = scmp.eq.s32.totalorder %s18, 3
      %p120 = por %p118, %p119
      %p122 = scmp.ne.s32.totalorder %s105, %s121
      %p123 = scmp.eq.s32.totalorder %s18, 0
      %p124 = por %p122, %p123
      %s125 = ssub.s32 %s20, %s34
      %s126 = ssub.s32 %s19, %s38
      %s127 = sor.u32 %s125, %s126
      %p128 = scmp.eq.s32.totalorder %s127, 0
      %s130 = sadd.s32 %s129, 1
      %s131 = scalar_select %p128, %s129, %s130
      %p134 = pneg %p128
      %p135 = scmp.eq.s32.totalorder %s12, 3
      %p136 = por %p134, %p135
      %p137 = scmp.ne.s32.totalorder %s129, %s132
      %p138 = scmp.eq.s32.totalorder %s12, 0
      %p139 = por %p137, %p138
      %p140 = scmp.ne.s32.totalorder %s129, %s132
      %p141 = scmp.eq.s32.totalorder %s17, 3
      %p142 = por %p140, %p141
      %p143 = scmp.ne.s32.totalorder %s132, %s133
      %p144 = scmp.eq.s32.totalorder %s17, 0
      %p145 = por %p143, %p144
      %p146 = scmp.ne.s32.totalorder %s132, %s133
      %p147 = scmp.eq.s32.totalorder %s18, 3
      %p148 = por %p146, %p147
      %p150 = scmp.ne.s32.totalorder %s133, %s149
      %p151 = scmp.eq.s32.totalorder %s18, 0
      %p152 = por %p150, %p151
      %p153 = scmp.le.s32.totalorder 1, %s12
      %p154 = scmp.lt.s32.totalorder %s12, 5
      %p155 = pnand %p153, %p154
      %p156 = pneg %p155
      // Predicated region
      $region9: #{tpu_custom_call.1} parent=5 // pred_check
        _
      $region10: #{tpu_custom_call.1} parent=5 // pred_check_branch
        %158 = sbr.rel (%p155) target = $region12
      $region11: #{tpu_custom_call.1} parent=5 // pred_region
        %s159 = ssub.s32 %s12, 1
      $region12: #{tpu_custom_call.1} parent=5 // pred_fallthru
        _
      %p160 = scmp.lt.s32.totalorder %s12, 4
      // Predicated region
      $region13: #{tpu_custom_call.1} parent=5 // pred_check
        %p161 = pneg %p160
      $region14: #{tpu_custom_call.1} parent=5 // pred_check_branch
        %163 = sbr.rel (%p161) target = $region16
      $region15: #{tpu_custom_call.1} parent=5 // pred_region
        // Predicated region
        $region17: #{tpu_custom_call.1} parent=15 // pred_check
          %p164 = pneg %p55
        $region18: #{tpu_custom_call.1} parent=15 // pred_check_branch
          %166 = sbr.rel (%p164) target = $region20
        $region19: #{tpu_custom_call.1} parent=15 // pred_region
          %p167 = scmp.lt.s32.totalorder %s20, 1
          %s168 = scalar_select %p167, %s20, 1
          %p169 = scmp.lt.s32.totalorder %s19, 1
          %s170 = scalar_select %p169, %s19, 1
          %p171 = scmp.lt.s32.totalorder %s21, 0
          %s172 = scalar_select %p171, %s21, 0
          %s173 = smul.addr %s172, 3
          %s174 = smul.addr %s170, 3
          %s175 = sadd.s32 %s173, %s174
          %s176 = smul.addr %s168, 6
          %s177 = sadd.s32 %s175, %s176
          %s178 = scalar_lea.vmem %s0, %s177
        $region20: #{tpu_custom_call.1} parent=15 // pred_fallthru
          _
        // Predicated region
        $region21: #{tpu_custom_call.1} parent=15 // pred_check
          %p179 = pneg %p83
        $region22: #{tpu_custom_call.1} parent=15 // pred_check_branch
          %181 = sbr.rel (%p179) target = $region24
        $region23: #{tpu_custom_call.1} parent=15 // pred_region
          %p182 = scmp.lt.s32.totalorder %s19, 1
          %s183 = scalar_select %p182, %s19, 1
          %p184 = scmp.lt.s32.totalorder %s21, 0
          %s185 = scalar_select %p184, %s21, 0
          %s186 = smul.addr %s185, 9
          %s187 = smul.addr %s183, 9
          %s188 = sadd.s32 %s186, %s187
          %s189 = smul.addr %s188, 4
          %s190 = scalar_lea.vmem %s1, %s189
        $region24: #{tpu_custom_call.1} parent=15 // pred_fallthru
          _
        // Predicated region
        $region25: #{tpu_custom_call.1} parent=15 // pred_check
          %p191 = pneg %p111
        $region26: #{tpu_custom_call.1} parent=15 // pred_check_branch
          %193 = sbr.rel (%p191) target = $region28
        $region27: #{tpu_custom_call.1} parent=15 // pred_region
          %p194 = scmp.lt.s32.totalorder %s20, 1
          %s195 = scalar_select %p194, %s20, 1
          %p196 = scmp.lt.s32.totalorder %s19, 1
          %s197 = scalar_select %p196, %s19, 1
          %s198 = smul.addr %s195, 2
          %s199 = sadd.s32 %s197, %s198
          %s200 = smul.addr %s199, 8
          %s201 = scalar_lea.vmem %s2, %s200
        $region28: #{tpu_custom_call.1} parent=15 // pred_fallthru
          _
      $region16: #{tpu_custom_call.1} parent=5 // pred_fallthru
        _
      %p202 = scmp.le.s32.totalorder 1, %s12
      %p203 = scmp.lt.s32.totalorder %s12, 5
      %p204 = pnand %p202, %p203
      %p205 = pneg %p204
      // Predicated region
      $region29: #{tpu_custom_call.1} parent=5 // pred_check
        _
      $region30: #{tpu_custom_call.1} parent=5 // pred_check_branch
        %207 = sbr.rel (%p204) target = $region32
      $region31: #{tpu_custom_call.1} parent=5 // pred_region
        %s208 = ssub.s32 %s12, 1
        %p209 = scmp.lt.s32.totalorder %s23, 1
        %s210 = scalar_select %p209, %s23, 1
        %p211 = scmp.lt.s32.totalorder %s22, 1
        %s212 = scalar_select %p211, %s22, 1
        %p213 = scmp.lt.s32.totalorder %s24, 0
        %s214 = scalar_select %p213, %s24, 0
        %s215 = smul.addr %s214, 3
        %s216 = smul.addr %s212, 3
        %s217 = sadd.s32 %s215, %s216
        %s218 = smul.addr %s210, 6
        %s219 = sadd.s32 %s217, %s218
        %s220 = scalar_lea.vmem %s0, %s219
        %p221 = pneg %p61
        %p222 = pneg %p58
        %p223 = scmp.lt.s32.totalorder %s22, 1
        %s224 = scalar_select %p223, %s22, 1
        %p225 = scmp.lt.s32.totalorder %s24, 0
        %s226 = scalar_select %p225, %s24, 0
        %s227 = smul.addr %s226, 9
        %s228 = smul.addr %s224, 9
        %s229 = sadd.s32 %s227, %s228
        %s230 = smul.addr %s229, 4
        %s231 = scalar_lea.vmem %s1, %s230
        %p232 = pneg %p89
        %p233 = pneg %p86
        %p234 = scmp.lt.s32.totalorder %s23, 1
        %s235 = scalar_select %p234, %s23, 1
        %p236 = scmp.lt.s32.totalorder %s22, 1
        %s237 = scalar_select %p236, %s22, 1
        %s238 = smul.addr %s235, 2
        %s239 = sadd.s32 %s237, %s238
        %s240 = smul.addr %s239, 8
        %s241 = scalar_lea.vmem %s2, %s240
        %p242 = pneg %p117
        %p243 = pneg %p114
        %p244 = pneg %p145
        %p245 = pneg %p142
        %s246 = sand.u32 %s132, 1
        %s247 = scalar_lea.sflag [#allocation4], %s246
        %s248 = sand.u32 %s132, 1
        %s249 = smul.addr %s248, 24
        %s250 = scalar_lea.vmem [#allocation3], %s249
        %p251 = scmp.lt.s32.totalorder %s23, 1
        %s252 = scalar_select %p251, %s23, 1
        %p253 = scmp.lt.s32.totalorder %s22, 1
        %s254 = scalar_select %p253, %s22, 1
        %p255 = scmp.lt.s32.totalorder %s24, 0
        %s256 = scalar_select %p255, %s24, 0
        %s257 = smul.addr %s256, 3
        %s258 = smul.addr %s254, 3
        %s259 = sadd.s32 %s257, %s258
        %s260 = smul.addr %s252, 6
        %s261 = sadd.s32 %s259, %s260
        %s262 = scalar_lea.vmem %s0, %s261
        %p263 = scmp.lt.s32.totalorder %s22, 1
        %s264 = scalar_select %p263, %s22, 1
        %p265 = scmp.lt.s32.totalorder %s24, 0
        %s266 = scalar_select %p265, %s24, 0
        %s267 = smul.addr %s266, 9
        %s268 = smul.addr %s264, 9
        %s269 = sadd.s32 %s267, %s268
        %s270 = smul.addr %s269, 4
        %s271 = scalar_lea.vmem %s1, %s270
        %p272 = scmp.lt.s32.totalorder %s23, 1
        %s273 = scalar_select %p272, %s23, 1
        %p274 = scmp.lt.s32.totalorder %s22, 1
        %s275 = scalar_select %p274, %s22, 1
        %s276 = smul.addr %s273, 2
        %s277 = sadd.s32 %s275, %s276
        %s278 = smul.addr %s277, 8
        %s279 = scalar_lea.vmem %s2, %s278
        %p281 = scmp.eq.s32.totalorder %s24, 0
        // Predicated region
        $region33: #{tpu_custom_call.1} parent=31 // pred_check
          %p282 = pneg %p281
        $region34: #{tpu_custom_call.1} parent=31 // pred_check_branch
          %284 = sbr.rel (%p282) target = $region36
        $region35: #{tpu_custom_call.1} parent=31 // pred_region
          %285 = vst [vmem:[#allocation2] sm:$0xff] 0.0
          %286 = vst [vmem:[#allocation2 + $0x8] sm:$0xff] 0.0
          %vm287 = vcmask 261120
          %288 = vst.msk [vmem:[#allocation2 + $0x10] sm:$0xff] %vm287, 0.0
        $region36: #{tpu_custom_call.1} parent=31 // pred_fallthru
          _
        %v289 = vld [vmem:[#allocation2] sm:$0xff]
        %v290 = vld [vmem:[#allocation2 + $0x8] sm:$0xff]
        %v291 = vld [vmem:[#allocation2 + $0x10] sm:$0xff]
        %v292 = vld [vmem:[%s262] sm:$0x7]
        %v293 = vld [vmem:[%s271] sm:$0xf]
        %v296 = vunpack.c.l.s4 1966171168
        %v297 = vunpack.c.0.s8 %v296
        %v298 = vlaneseq
        %v299 = vshrl.u32 %v298, 7
        %v300 = vsub.s32 %v297, %v299
        %v301 = vrot.slane %v292, %v300
        %v302 = vcombine.high %v301, %v301
        %v304 = vunpack.c.l.s4 1966171168
        %v305 = vunpack.c.0.s8 %v304
        %v306 = vlaneseq
        %v307 = vshrl.u32 %v306, 7
        %v308 = vsub.s32 %v305, %v307
        %v309 = vrot.slane %v301, %v308
        %v311 = vunpack.c.l.s4 1966171168
        %v312 = vunpack.c.0.s8 %v311
        %v313 = vlaneseq
        %v314 = vshrl.u32 %v313, 7
        %v315 = vsub.s32 %v312, %v314
        %v316 = vrot.slane %v302, %v315
        %v317 = vcombine.high %v309, %v309
        %vm318 = vcmask 15360
        %v320 = vsel %vm318, %v293, 0
        %vm322 = vcmask 1040384
        %v324 = vsel %vm322, %v309, 0
        %v327 = vsel %vm322, %v316, 0
        %v330 = vsel %vm322, %v317, 0
        %332 = vmatprep.subr.bf16.mxu0 0
        %333 = vmatpush1.bf16.msra.mxu0 0
        %334 = vmatprep.subr.bf16.mxu0 0
        %335 = vmatpush1.bf16.msra.mxu0 0
        %336 = vmatprep.subr.bf16.mxu0 0
        %337 = vmatpush1.bf16.msra.mxu0 0
        %338 = vmatprep.subr.bf16.mxu0 0
        %339 = vmatpush1.bf16.msra.mxu0 0
        %340 = vmatprep.subr.bf16.mxu0 0
        %341 = vmatpush1.bf16.msra.mxu0 0
        %342 = vmatprep.subr.bf16.mxu0 0
        %343 = vmatpush1.bf16.msra.mxu0 0
        %344 = vmatprep.subr.bf16.mxu0 0
        %345 = vmatpush1.bf16.msra.mxu0 0
        %346 = vmatprep.subr.bf16.mxu0 %v327
        %347 = vmatpush1.bf16.msra.mxu0 %v324
        %348 = vmatprep.subr.bf16.mxu0 0
        %349 = vmatpush2.bf16.msra.mxu0 0
        %350 = vmatprep.subr.bf16.mxu0 0
        %351 = vmatpush2.bf16.msra.mxu0 0
        %352 = vmatprep.subr.bf16.mxu0 0
        %353 = vmatpush2.bf16.msra.mxu0 0
        %354 = vmatprep.subr.bf16.mxu0 0
        %355 = vmatpush2.bf16.msra.mxu0 0
        %356 = vmatprep.subr.bf16.mxu0 0
        %357 = vmatpush2.bf16.msra.mxu0 0
        %358 = vmatprep.subr.bf16.mxu0 0
        %359 = vmatpush2.bf16.msra.mxu0 0
        %360 = vmatprep.subr.bf16.mxu0 0
        %361 = vmatpush2.bf16.msra.mxu0 0
        %362 = vmatprep.subr.bf16.mxu0 0
        %363 = vmatpush2.bf16.msra.mxu0 0
        %364 = vmatprep.mubr.bf16.mxu0 0
        %365 = vmatmul.mubr.bf16.gmra.mxu0 %v320
        %v366 = vpop.f32.mrf.mxu0
        %v367 = vadd.f32 0.0, %v366
        %v368 = vpop.f32.mrf.mxu0
        %v369 = vadd.f32 0.0, %v368
        %v370 = vpop.f32.mrf.mxu0
        %v371 = vpop.f32.mrf.mxu0
        %372 = vdwg.mxu0
        %373 = vmatprep.subr.bf16.mxu0 0
        %374 = vmatpush1.bf16.msra.mxu0 0
        %375 = vmatprep.subr.bf16.mxu0 0
        %376 = vmatpush1.bf16.msra.mxu0 0
        %377 = vmatprep.subr.bf16.mxu0 0
        %378 = vmatpush1.bf16.msra.mxu0 0
        %379 = vmatprep.subr.bf16.mxu0 0
        %380 = vmatpush1.bf16.msra.mxu0 0
        %381 = vmatprep.subr.bf16.mxu0 0
        %382 = vmatpush1.bf16.msra.mxu0 0
        %383 = vmatprep.subr.bf16.mxu0 0
        %384 = vmatpush1.bf16.msra.mxu0 0
        %385 = vmatprep.subr.bf16.mxu0 0
        %386 = vmatpush1.bf16.msra.mxu0 0
        %387 = vmatprep.subr.bf16.mxu0 0
        %388 = vmatpush1.bf16.msra.mxu0 %v330
        %389 = vmatprep.subr.bf16.mxu0 0
        %390 = vmatpush2.bf16.msra.mxu0 0
        %391 = vmatprep.subr.bf16.mxu0 0
        %392 = vmatpush2.bf16.msra.mxu0 0
        %393 = vmatprep.subr.bf16.mxu0 0
        %394 = vmatpush2.bf16.msra.mxu0 0
        %395 = vmatprep.subr.bf16.mxu0 0
        %396 = vmatpush2.bf16.msra.mxu0 0
        %397 = vmatprep.subr.bf16.mxu0 0
        %398 = vmatpush2.bf16.msra.mxu0 0
        %399 = vmatprep.subr.bf16.mxu0 0
        %400 = vmatpush2.bf16.msra.mxu0 0
        %401 = vmatprep.subr.bf16.mxu0 0
        %402 = vmatpush2.bf16.msra.mxu0 0
        %403 = vmatprep.subr.bf16.mxu0 0
        %404 = vmatpush2.bf16.msra.mxu0 0
        %405 = vmatprep.mubr.bf16.mxu0 0
        %406 = vmatmul.mubr.bf16.gmra.mxu0 %v320
        %v407 = vpop.f32.mrf.mxu0
        %v408 = vadd.f32 0.0, %v407
        %v409 = vpop.f32.mrf.mxu0
        %v410 = vpop.f32.mrf.mxu0
        %v411 = vpop.f32.mrf.mxu0
        %412 = vdwg.mxu0
        %v413 = vadd.f32 %v289, %v367
        %v414 = vadd.f32 %v290, %v369
        %v415 = vadd.f32 %v291, %v408
        %v416 = vld [vmem:[%s262] sm:$0x7]
        %s417 = scalar_lea.vmem %s271, 4
        %v418 = vld [vmem:[%s417] sm:$0xf]
        %v421 = vunpack.c.l.s4 1966171168
        %v422 = vunpack.c.0.s8 %v421
        %v423 = vlaneseq
        %v424 = vshrl.u32 %v423, 7
        %v425 = vsub.s32 %v422, %v424
        %v426 = vrot.slane %v416, %v425
        %v427 = vcombine.high %v426, %v426
        %v429 = vunpack.c.l.s4 1966171168
        %v430 = vunpack.c.0.s8 %v429
        %v431 = vlaneseq
        %v432 = vshrl.u32 %v431, 7
        %v433 = vsub.s32 %v430, %v432
        %v434 = vrot.slane %v426, %v433
        %v436 = vunpack.c.l.s4 1966171168
        %v437 = vunpack.c.0.s8 %v436
        %v438 = vlaneseq
        %v439 = vshrl.u32 %v438, 7
        %v440 = vsub.s32 %v437, %v439
        %v441 = vrot.slane %v427, %v440
        %v442 = vcombine.high %v434, %v434
        %443 = vrot.lane.b32.xlu0 %v434, 127
        %v444 = vpop.permute.xlu0 %443
        %445 = vrot.lane.b32.xlu0 %v441, 127
        %v446 = vpop.permute.xlu0 %445
        %447 = vrot.lane.b32.xlu0 %v442, 127
        %v448 = vpop.permute.xlu0 %447
        %vm449 = vcmask 1039360
        %v450 = vsel %vm449, %v444, %v446
        %v451 = vsel %vm449, %v446, %v448
        %v453 = vsel %vm318, %v418, 0
        %v456 = vsel %vm322, %v450, 0
        %v459 = vsel %vm322, %v451, 0
        %v462 = vsel %vm322, %v448, 0
        %464 = vmatprep.subr.bf16.mxu0 0
        %465 = vmatpush1.bf16.msra.mxu0 0
        %466 = vmatprep.subr.bf16.mxu0 0
        %467 = vmatpush1.bf16.msra.mxu0 0
        %468 = vmatprep.subr.bf16.mxu0 0
        %469 = vmatpush1.bf16.msra.mxu0 0
        %470 = vmatprep.subr.bf16.mxu0 0
        %471 = vmatpush1.bf16.msra.mxu0 0
        %472 = vmatprep.subr.bf16.mxu0 0
        %473 = vmatpush1.bf16.msra.mxu0 0
        %474 = vmatprep.subr.bf16.mxu0 0
        %475 = vmatpush1.bf16.msra.mxu0 0
        %476 = vmatprep.subr.bf16.mxu0 0
        %477 = vmatpush1.bf16.msra.mxu0 0
        %478 = vmatprep.subr.bf16.mxu0 %v459
        %479 = vmatpush1.bf16.msra.mxu0 %v456
        %480 = vmatprep.subr.bf16.mxu0 0
        %481 = vmatpush2.bf16.msra.mxu0 0
        %482 = vmatprep.subr.bf16.mxu0 0
        %483 = vmatpush2.bf16.msra.mxu0 0
        %484 = vmatprep.subr.bf16.mxu0 0
        %485 = vmatpush2.bf16.msra.mxu0 0
        %486 = vmatprep.subr.bf16.mxu0 0
        %487 = vmatpush2.bf16.msra.mxu0 0
        %488 = vmatprep.subr.bf16.mxu0 0
        %489 = vmatpush2.bf16.msra.mxu0 0
        %490 = vmatprep.subr.bf16.mxu0 0
        %491 = vmatpush2.bf16.msra.mxu0 0
        %492 = vmatprep.subr.bf16.mxu0 0
        %493 = vmatpush2.bf16.msra.mxu0 0
        %494 = vmatprep.subr.bf16.mxu0 0
        %495 = vmatpush2.bf16.msra.mxu0 0
        %496 = vmatprep.mubr.bf16.mxu0 0
        %497 = vmatmul.mubr.bf16.gmra.mxu0 %v453
        %v498 = vpop.f32.mrf.mxu0
        %v499 = vadd.f32 0.0, %v498
        %v500 = vpop.f32.mrf.mxu0
        %v501 = vadd.f32 0.0, %v500
        %v502 = vpop.f32.mrf.mxu0
        %v503 = vpop.f32.mrf.mxu0
        %504 = vdwg.mxu0
        %505 = vmatprep.subr.bf16.mxu0 0
        %506 = vmatpush1.bf16.msra.mxu0 0
        %507 = vmatprep.subr.bf16.mxu0 0
        %508 = vmatpush1.bf16.msra.mxu0 0
        %509 = vmatprep.subr.bf16.mxu0 0
        %510 = vmatpush1.bf16.msra.mxu0 0
        %511 = vmatprep.subr.bf16.mxu0 0
        %512 = vmatpush1.bf16.msra.mxu0 0
        %513 = vmatprep.subr.bf16.mxu0 0
        %514 = vmatpush1.bf16.msra.mxu0 0
        %515 = vmatprep.subr.bf16.mxu0 0
        %516 = vmatpush1.bf16.msra.mxu0 0
        %517 = vmatprep.subr.bf16.mxu0 0
        %518 = vmatpush1.bf16.msra.mxu0 0
        %519 = vmatprep.subr.bf16.mxu0 0
        %520 = vmatpush1.bf16.msra.mxu0 %v462
        %521 = vmatprep.subr.bf16.mxu0 0
        %522 = vmatpush2.bf16.msra.mxu0 0
        %523 = vmatprep.subr.bf16.mxu0 0
        %524 = vmatpush2.bf16.msra.mxu0 0
        %525 = vmatprep.subr.bf16.mxu0 0
        %526 = vmatpush2.bf16.msra.mxu0 0
        %527 = vmatprep.subr.bf16.mxu0 0
        %528 = vmatpush2.bf16.msra.mxu0 0
        %529 = vmatprep.subr.bf16.mxu0 0
        %530 = vmatpush2.bf16.msra.mxu0 0
        %531 = vmatprep.subr.bf16.mxu0 0
        %532 = vmatpush2.bf16.msra.mxu0 0
        %533 = vmatprep.subr.bf16.mxu0 0
        %534 = vmatpush2.bf16.msra.mxu0 0
        %535 = vmatprep.subr.bf16.mxu0 0
        %536 = vmatpush2.bf16.msra.mxu0 0
        %537 = vmatprep.mubr.bf16.mxu0 0
        %538 = vmatmul.mubr.bf16.gmra.mxu0 %v453
        %v539 = vpop.f32.mrf.mxu0
        %v540 = vadd.f32 0.0, %v539
        %v541 = vpop.f32.mrf.mxu0
        %v542 = vpop.f32.mrf.mxu0
        %v543 = vpop.f32.mrf.mxu0
        %544 = vdwg.mxu0
        %v545 = vadd.f32 %v413, %v499
        %v546 = vadd.f32 %v414, %v501
        %v547 = vadd.f32 %v415, %v540
        %v548 = vld [vmem:[%s262] sm:$0x7]
        %s549 = scalar_lea.vmem %s271, 8
        %v550 = vld [vmem:[%s549] sm:$0xf]
        %v553 = vunpack.c.l.s4 1966171168
        %v554 = vunpack.c.0.s8 %v553
        %v555 = vlaneseq
        %v556 = vshrl.u32 %v555, 7
        %v557 = vsub.s32 %v554, %v556
        %v558 = vrot.slane %v548, %v557
        %v559 = vcombine.high %v558, %v558
        %v561 = vunpack.c.l.s4 1966171168
        %v562 = vunpack.c.0.s8 %v561
        %v563 = vlaneseq
        %v564 = vshrl.u32 %v563, 7
        %v565 = vsub.s32 %v562, %v564
        %v566 = vrot.slane %v558, %v565
        %v568 = vunpack.c.l.s4 1966171168
        %v569 = vunpack.c.0.s8 %v568
        %v570 = vlaneseq
        %v571 = vshrl.u32 %v570, 7
        %v572 = vsub.s32 %v569, %v571
        %v573 = vrot.slane %v559, %v572
        %v574 = vcombine.high %v566, %v566
        %575 = vrot.lane.b32.xlu0 %v566, 126
        %v576 = vpop.permute.xlu0 %575
        %577 = vrot.lane.b32.xlu0 %v573, 126
        %v578 = vpop.permute.xlu0 %577
        %579 = vrot.lane.b32.xlu0 %v574, 126
        %v580 = vpop.permute.xlu0 %579
        %vm581 = vcmask 1031168
        %v582 = vsel %vm581, %v576, %v578
        %v583 = vsel %vm581, %v578, %v580
        %v585 = vsel %vm318, %v550, 0
        %v588 = vsel %vm322, %v582, 0
        %v591 = vsel %vm322, %v583, 0
        %v594 = vsel %vm322, %v580, 0
        %596 = vmatprep.subr.bf16.mxu0 0
        %597 = vmatpush1.bf16.msra.mxu0 0
        %598 = vmatprep.subr.bf16.mxu0 0
        %599 = vmatpush1.bf16.msra.mxu0 0
        %600 = vmatprep.subr.bf16.mxu0 0
        %601 = vmatpush1.bf16.msra.mxu0 0
        %602 = vmatprep.subr.bf16.mxu0 0
        %603 = vmatpush1.bf16.msra.mxu0 0
        %604 = vmatprep.subr.bf16.mxu0 0
        %605 = vmatpush1.bf16.msra.mxu0 0
        %606 = vmatprep.subr.bf16.mxu0 0
        %607 = vmatpush1.bf16.msra.mxu0 0
        %608 = vmatprep.subr.bf16.mxu0 0
        %609 = vmatpush1.bf16.msra.mxu0 0
        %610 = vmatprep.subr.bf16.mxu0 %v591
        %611 = vmatpush1.bf16.msra.mxu0 %v588
        %612 = vmatprep.subr.bf16.mxu0 0
        %613 = vmatpush2.bf16.msra.mxu0 0
        %614 = vmatprep.subr.bf16.mxu0 0
        %615 = vmatpush2.bf16.msra.mxu0 0
        %616 = vmatprep.subr.bf16.mxu0 0
        %617 = vmatpush2.bf16.msra.mxu0 0
        %618 = vmatprep.subr.bf16.mxu0 0
        %619 = vmatpush2.bf16.msra.mxu0 0
        %620 = vmatprep.subr.bf16.mxu0 0
        %621 = vmatpush2.bf16.msra.mxu0 0
        %622 = vmatprep.subr.bf16.mxu0 0
        %623 = vmatpush2.bf16.msra.mxu0 0
        %624 = vmatprep.subr.bf16.mxu0 0
        %625 = vmatpush2.bf16.msra.mxu0 0
        %626 = vmatprep.subr.bf16.mxu0 0
        %627 = vmatpush2.bf16.msra.mxu0 0
        %628 = vmatprep.mubr.bf16.mxu0 0
        %629 = vmatmul.mubr.bf16.gmra.mxu0 %v585
        %v630 = vpop.f32.mrf.mxu0
        %v631 = vadd.f32 0.0, %v630
        %v632 = vpop.f32.mrf.mxu0
        %v633 = vadd.f32 0.0, %v632
        %v634 = vpop.f32.mrf.mxu0
        %v635 = vpop.f32.mrf.mxu0
        %636 = vdwg.mxu0
        %637 = vmatprep.subr.bf16.mxu0 0
        %638 = vmatpush1.bf16.msra.mxu0 0
        %639 = vmatprep.subr.bf16.mxu0 0
        %640 = vmatpush1.bf16.msra.mxu0 0
        %641 = vmatprep.subr.bf16.mxu0 0
        %642 = vmatpush1.bf16.msra.mxu0 0
        %643 = vmatprep.subr.bf16.mxu0 0
        %644 = vmatpush1.bf16.msra.mxu0 0
        %645 = vmatprep.subr.bf16.mxu0 0
        %646 = vmatpush1.bf16.msra.mxu0 0
        %647 = vmatprep.subr.bf16.mxu0 0
        %648 = vmatpush1.bf16.msra.mxu0 0
        %649 = vmatprep.subr.bf16.mxu0 0
        %650 = vmatpush1.bf16.msra.mxu0 0
        %651 = vmatprep.subr.bf16.mxu0 0
        %652 = vmatpush1.bf16.msra.mxu0 %v594
        %653 = vmatprep.subr.bf16.mxu0 0
        %654 = vmatpush2.bf16.msra.mxu0 0
        %655 = vmatprep.subr.bf16.mxu0 0
        %656 = vmatpush2.bf16.msra.mxu0 0
        %657 = vmatprep.subr.bf16.mxu0 0
        %658 = vmatpush2.bf16.msra.mxu0 0
        %659 = vmatprep.subr.bf16.mxu0 0
        %660 = vmatpush2.bf16.msra.mxu0 0
        %661 = vmatprep.subr.bf16.mxu0 0
        %662 = vmatpush2.bf16.msra.mxu0 0
        %663 = vmatprep.subr.bf16.mxu0 0
        %664 = vmatpush2.bf16.msra.mxu0 0
        %665 = vmatprep.subr.bf16.mxu0 0
        %666 = vmatpush2.bf16.msra.mxu0 0
        %667 = vmatprep.subr.bf16.mxu0 0
        %668 = vmatpush2.bf16.msra.mxu0 0
        %669 = vmatprep.mubr.bf16.mxu0 0
        %670 = vmatmul.mubr.bf16.gmra.mxu0 %v585
        %v671 = vpop.f32.mrf.mxu0
        %v672 = vadd.f32 0.0, %v671
        %v673 = vpop.f32.mrf.mxu0
        %v674 = vpop.f32.mrf.mxu0
        %v675 = vpop.f32.mrf.mxu0
        %676 = vdwg.mxu0
        %v677 = vadd.f32 %v545, %v631
        %v678 = vadd.f32 %v546, %v633
        %v679 = vadd.f32 %v547, %v672
        %v680 = vld [vmem:[%s262] sm:$0x7]
        %s681 = scalar_lea.vmem %s271, 12
        %v682 = vld [vmem:[%s681] sm:$0xf]
        %v685 = vunpack.c.l.s4 1966171168
        %v686 = vunpack.c.0.s8 %v685
        %v687 = vlaneseq
        %v688 = vshrl.u32 %v687, 7
        %v689 = vsub.s32 %v686, %v688
        %v690 = vrot.slane %v680, %v689
        %v691 = vcombine.high %v690, %v690
        %v693 = vunpack.c.l.s4 1966171168
        %v694 = vunpack.c.0.s8 %v693
        %v695 = vlaneseq
        %v696 = vshrl.u32 %v695, 7
        %v697 = vsub.s32 %v694, %v696
        %v698 = vrot.slane %v690, %v697
        %v700 = vunpack.c.l.s4 1966171168
        %v701 = vunpack.c.0.s8 %v700
        %v702 = vlaneseq
        %v703 = vshrl.u32 %v702, 7
        %v704 = vsub.s32 %v701, %v703
        %v705 = vrot.slane %v691, %v704
        %v706 = vcombine.high %v698, %v698
        %707 = vrot.lane.b32.xlu0 %v698, 110
        %v708 = vpop.permute.xlu0 %707
        %709 = vrot.lane.b32.xlu0 %v705, 110
        %v710 = vpop.permute.xlu0 %709
        %711 = vrot.lane.b32.xlu0 %v706, 110
        %v712 = vpop.permute.xlu0 %711
        %vm713 = vcmask 900096
        %v714 = vsel %vm713, %v708, %v710
        %v715 = vsel %vm713, %v710, %v712
        %v717 = vsel %vm318, %v682, 0
        %v720 = vsel %vm322, %v714, 0
        %v723 = vsel %vm322, %v715, 0
        %v726 = vsel %vm322, %v712, 0
        %728 = vmatprep.subr.bf16.mxu0 0
        %729 = vmatpush1.bf16.msra.mxu0 0
        %730 = vmatprep.subr.bf16.mxu0 0
        %731 = vmatpush1.bf16.msra.mxu0 0
        %732 = vmatprep.subr.bf16.mxu0 0
        %733 = vmatpush1.bf16.msra.mxu0 0
        %734 = vmatprep.subr.bf16.mxu0 0
        %735 = vmatpush1.bf16.msra.mxu0 0
        %736 = vmatprep.subr.bf16.mxu0 0
        %737 = vmatpush1.bf16.msra.mxu0 0
        %738 = vmatprep.subr.bf16.mxu0 0
        %739 = vmatpush1.bf16.msra.mxu0 0
        %740 = vmatprep.subr.bf16.mxu0 0
        %741 = vmatpush1.bf16.msra.mxu0 0
        %742 = vmatprep.subr.bf16.mxu0 %v723
        %743 = vmatpush1.bf16.msra.mxu0 %v720
        %744 = vmatprep.subr.bf16.mxu0 0
        %745 = vmatpush2.bf16.msra.mxu0 0
        %746 = vmatprep.subr.bf16.mxu0 0
        %747 = vmatpush2.bf16.msra.mxu0 0
        %748 = vmatprep.subr.bf16.mxu0 0
        %749 = vmatpush2.bf16.msra.mxu0 0
        %750 = vmatprep.subr.bf16.mxu0 0
        %751 = vmatpush2.bf16.msra.mxu0 0
        %752 = vmatprep.subr.bf16.mxu0 0
        %753 = vmatpush2.bf16.msra.mxu0 0
        %754 = vmatprep.subr.bf16.mxu0 0
        %755 = vmatpush2.bf16.msra.mxu0 0
        %756 = vmatprep.subr.bf16.mxu0 0
        %757 = vmatpush2.bf16.msra.mxu0 0
        %758 = vmatprep.subr.bf16.mxu0 0
        %759 = vmatpush2.bf16.msra.mxu0 0
        %760 = vmatprep.mubr.bf16.mxu0 0
        %761 = vmatmul.mubr.bf16.gmra.mxu0 %v717
        %v762 = vpop.f32.mrf.mxu0
        %v763 = vadd.f32 0.0, %v762
        %v764 = vpop.f32.mrf.mxu0
        %v765 = vadd.f32 0.0, %v764
        %v766 = vpop.f32.mrf.mxu0
        %v767 = vpop.f32.mrf.mxu0
        %768 = vdwg.mxu0
        %769 = vmatprep.subr.bf16.mxu0 0
        %770 = vmatpush1.bf16.msra.mxu0 0
        %771 = vmatprep.subr.bf16.mxu0 0
        %772 = vmatpush1.bf16.msra.mxu0 0
        %773 = vmatprep.subr.bf16.mxu0 0
        %774 = vmatpush1.bf16.msra.mxu0 0
        %775 = vmatprep.subr.bf16.mxu0 0
        %776 = vmatpush1.bf16.msra.mxu0 0
        %777 = vmatprep.subr.bf16.mxu0 0
        %778 = vmatpush1.bf16.msra.mxu0 0
        %779 = vmatprep.subr.bf16.mxu0 0
        %780 = vmatpush1.bf16.msra.mxu0 0
        %781 = vmatprep.subr.bf16.mxu0 0
        %782 = vmatpush1.bf16.msra.mxu0 0
        %783 = vmatprep.subr.bf16.mxu0 0
        %784 = vmatpush1.bf16.msra.mxu0 %v726
        %785 = vmatprep.subr.bf16.mxu0 0
        %786 = vmatpush2.bf16.msra.mxu0 0
        %787 = vmatprep.subr.bf16.mxu0 0
        %788 = vmatpush2.bf16.msra.mxu0 0
        %789 = vmatprep.subr.bf16.mxu0 0
        %790 = vmatpush2.bf16.msra.mxu0 0
        %791 = vmatprep.subr.bf16.mxu0 0
        %792 = vmatpush2.bf16.msra.mxu0 0
        %793 = vmatprep.subr.bf16.mxu0 0
        %794 = vmatpush2.bf16.msra.mxu0 0
        %795 = vmatprep.subr.bf16.mxu0 0
        %796 = vmatpush2.bf16.msra.mxu0 0
        %797 = vmatprep.subr.bf16.mxu0 0
        %798 = vmatpush2.bf16.msra.mxu0 0
        %799 = vmatprep.subr.bf16.mxu0 0
        %800 = vmatpush2.bf16.msra.mxu0 0
        %801 = vmatprep.mubr.bf16.mxu0 0
        %802 = vmatmul.mubr.bf16.gmra.mxu0 %v717
        %v803 = vpop.f32.mrf.mxu0
        %v804 = vadd.f32 0.0, %v803
        %v805 = vpop.f32.mrf.mxu0
        %v806 = vpop.f32.mrf.mxu0
        %v807 = vpop.f32.mrf.mxu0
        %808 = vdwg.mxu0
        %v809 = vadd.f32 %v677, %v763
        %v810 = vadd.f32 %v678, %v765
        %v811 = vadd.f32 %v679, %v804
        %v812 = vld [vmem:[%s262] sm:$0x7]
        %s813 = scalar_lea.vmem %s271, 16
        %v814 = vld [vmem:[%s813] sm:$0xf]
        %v817 = vunpack.c.l.s4 1966171168
        %v818 = vunpack.c.0.s8 %v817
        %v819 = vlaneseq
        %v820 = vshrl.u32 %v819, 7
        %v821 = vsub.s32 %v818, %v820
        %v822 = vrot.slane %v812, %v821
        %v823 = vcombine.high %v822, %v822
        %v825 = vunpack.c.l.s4 1966171168
        %v826 = vunpack.c.0.s8 %v825
        %v827 = vlaneseq
        %v828 = vshrl.u32 %v827, 7
        %v829 = vsub.s32 %v826, %v828
        %v830 = vrot.slane %v822, %v829
        %v832 = vunpack.c.l.s4 1966171168
        %v833 = vunpack.c.0.s8 %v832
        %v834 = vlaneseq
        %v835 = vshrl.u32 %v834, 7
        %v836 = vsub.s32 %v833, %v835
        %v837 = vrot.slane %v823, %v836
        %v838 = vcombine.high %v830, %v830
        %839 = vrot.lane.b32.xlu0 %v830, 109
        %v840 = vpop.permute.xlu0 %839
        %841 = vrot.lane.b32.xlu0 %v837, 109
        %v842 = vpop.permute.xlu0 %841
        %843 = vrot.lane.b32.xlu0 %v838, 109
        %v844 = vpop.permute.xlu0 %843
        %vm845 = vcmask 891904
        %v846 = vsel %vm845, %v840, %v842
        %v847 = vsel %vm845, %v842, %v844
        %v849 = vsel %vm318, %v814, 0
        %v852 = vsel %vm322, %v846, 0
        %v855 = vsel %vm322, %v847, 0
        %v858 = vsel %vm322, %v844, 0
        %860 = vmatprep.subr.bf16.mxu0 0
        %861 = vmatpush1.bf16.msra.mxu0 0
        %862 = vmatprep.subr.bf16.mxu0 0
        %863 = vmatpush1.bf16.msra.mxu0 0
        %864 = vmatprep.subr.bf16.mxu0 0
        %865 = vmatpush1.bf16.msra.mxu0 0
        %866 = vmatprep.subr.bf16.mxu0 0
        %867 = vmatpush1.bf16.msra.mxu0 0
        %868 = vmatprep.subr.bf16.mxu0 0
        %869 = vmatpush1.bf16.msra.mxu0 0
        %870 = vmatprep.subr.bf16.mxu0 0
        %871 = vmatpush1.bf16.msra.mxu0 0
        %872 = vmatprep.subr.bf16.mxu0 0
        %873 = vmatpush1.bf16.msra.mxu0 0
        %874 = vmatprep.subr.bf16.mxu0 %v855
        %875 = vmatpush1.bf16.msra.mxu0 %v852
        %876 = vmatprep.subr.bf16.mxu0 0
        %877 = vmatpush2.bf16.msra.mxu0 0
        %878 = vmatprep.subr.bf16.mxu0 0
        %879 = vmatpush2.bf16.msra.mxu0 0
        %880 = vmatprep.subr.bf16.mxu0 0
        %881 = vmatpush2.bf16.msra.mxu0 0
        %882 = vmatprep.subr.bf16.mxu0 0
        %883 = vmatpush2.bf16.msra.mxu0 0
        %884 = vmatprep.subr.bf16.mxu0 0
        %885 = vmatpush2.bf16.msra.mxu0 0
        %886 = vmatprep.subr.bf16.mxu0 0
        %887 = vmatpush2.bf16.msra.mxu0 0
        %888 = vmatprep.subr.bf16.mxu0 0
        %889 = vmatpush2.bf16.msra.mxu0 0
        %890 = vmatprep.subr.bf16.mxu0 0
        %891 = vmatpush2.bf16.msra.mxu0 0
        %892 = vmatprep.mubr.bf16.mxu0 0
        %893 = vmatmul.mubr.bf16.gmra.mxu0 %v849
        %v894 = vpop.f32.mrf.mxu0
        %v895 = vadd.f32 0.0, %v894
        %v896 = vpop.f32.mrf.mxu0
        %v897 = vadd.f32 0.0, %v896
        %v898 = vpop.f32.mrf.mxu0
        %v899 = vpop.f32.mrf.mxu0
        %900 = vdwg.mxu0
        %901 = vmatprep.subr.bf16.mxu0 0
        %902 = vmatpush1.bf16.msra.mxu0 0
        %903 = vmatprep.subr.bf16.mxu0 0
        %904 = vmatpush1.bf16.msra.mxu0 0
        %905 = vmatprep.subr.bf16.mxu0 0
        %906 = vmatpush1.bf16.msra.mxu0 0
        %907 = vmatprep.subr.bf16.mxu0 0
        %908 = vmatpush1.bf16.msra.mxu0 0
        %909 = vmatprep.subr.bf16.mxu0 0
        %910 = vmatpush1.bf16.msra.mxu0 0
        %911 = vmatprep.subr.bf16.mxu0 0
        %912 = vmatpush1.bf16.msra.mxu0 0
        %913 = vmatprep.subr.bf16.mxu0 0
        %914 = vmatpush1.bf16.msra.mxu0 0
        %915 = vmatprep.subr.bf16.mxu0 0
        %916 = vmatpush1.bf16.msra.mxu0 %v858
        %917 = vmatprep.subr.bf16.mxu0 0
        %918 = vmatpush2.bf16.msra.mxu0 0
        %919 = vmatprep.subr.bf16.mxu0 0
        %920 = vmatpush2.bf16.msra.mxu0 0
        %921 = vmatprep.subr.bf16.mxu0 0
        %922 = vmatpush2.bf16.msra.mxu0 0
        %923 = vmatprep.subr.bf16.mxu0 0
        %924 = vmatpush2.bf16.msra.mxu0 0
        %925 = vmatprep.subr.bf16.mxu0 0
        %926 = vmatpush2.bf16.msra.mxu0 0
        %927 = vmatprep.subr.bf16.mxu0 0
        %928 = vmatpush2.bf16.msra.mxu0 0
        %929 = vmatprep.subr.bf16.mxu0 0
        %930 = vmatpush2.bf16.msra.mxu0 0
        %931 = vmatprep.subr.bf16.mxu0 0
        %932 = vmatpush2.bf16.msra.mxu0 0
        %933 = vmatprep.mubr.bf16.mxu0 0
        %934 = vmatmul.mubr.bf16.gmra.mxu0 %v849
        %v935 = vpop.f32.mrf.mxu0
        %v936 = vadd.f32 0.0, %v935
        %v937 = vpop.f32.mrf.mxu0
        %v938 = vpop.f32.mrf.mxu0
        %v939 = vpop.f32.mrf.mxu0
        %940 = vdwg.mxu0
        %v941 = vadd.f32 %v809, %v895
        %v942 = vadd.f32 %v810, %v897
        %v943 = vadd.f32 %v811, %v936
        %v944 = vld [vmem:[%s262] sm:$0x7]
        %s945 = scalar_lea.vmem %s271, 20
        %v946 = vld [vmem:[%s945] sm:$0xf]
        %v949 = vunpack.c.l.s4 1966171168
        %v950 = vunpack.c.0.s8 %v949
        %v951 = vlaneseq
        %v952 = vshrl.u32 %v951, 7
        %v953 = vsub.s32 %v950, %v952
        %v954 = vrot.slane %v944, %v953
        %v955 = vcombine.high %v954, %v954
        %v957 = vunpack.c.l.s4 1966171168
        %v958 = vunpack.c.0.s8 %v957
        %v959 = vlaneseq
        %v960 = vshrl.u32 %v959, 7
        %v961 = vsub.s32 %v958, %v960
        %v962 = vrot.slane %v954, %v961
        %v964 = vunpack.c.l.s4 1966171168
        %v965 = vunpack.c.0.s8 %v964
        %v966 = vlaneseq
        %v967 = vshrl.u32 %v966, 7
        %v968 = vsub.s32 %v965, %v967
        %v969 = vrot.slane %v955, %v968
        %v970 = vcombine.high %v962, %v962
        %971 = vrot.lane.b32.xlu0 %v962, 108
        %v972 = vpop.permute.xlu0 %971
        %973 = vrot.lane.b32.xlu0 %v969, 108
        %v974 = vpop.permute.xlu0 %973
        %975 = vrot.lane.b32.xlu0 %v970, 108
        %v976 = vpop.permute.xlu0 %975
        %vm977 = vcmask 883712
        %v978 = vsel %vm977, %v972, %v974
        %v979 = vsel %vm977, %v974, %v976
        %v981 = vsel %vm318, %v946, 0
        %v984 = vsel %vm322, %v978, 0
        %v987 = vsel %vm322, %v979, 0
        %v990 = vsel %vm322, %v976, 0
        %992 = vmatprep.subr.bf16.mxu0 0
        %993 = vmatpush1.bf16.msra.mxu0 0
        %994 = vmatprep.subr.bf16.mxu0 0
        %995 = vmatpush1.bf16.msra.mxu0 0
        %996 = vmatprep.subr.bf16.mxu0 0
        %997 = vmatpush1.bf16.msra.mxu0 0
        %998 = vmatprep.subr.bf16.mxu0 0
        %999 = vmatpush1.bf16.msra.mxu0 0
        %1000 = vmatprep.subr.bf16.mxu0 0
        %1001 = vmatpush1.bf16.msra.mxu0 0
        %1002 = vmatprep.subr.bf16.mxu0 0
        %1003 = vmatpush1.bf16.msra.mxu0 0
        %1004 = vmatprep.subr.bf16.mxu0 0
        %1005 = vmatpush1.bf16.msra.mxu0 0
        %1006 = vmatprep.subr.bf16.mxu0 %v987
        %1007 = vmatpush1.bf16.msra.mxu0 %v984
        %1008 = vmatprep.subr.bf16.mxu0 0
        %1009 = vmatpush2.bf16.msra.mxu0 0
        %1010 = vmatprep.subr.bf16.mxu0 0
        %1011 = vmatpush2.bf16.msra.mxu0 0
        %1012 = vmatprep.subr.bf16.mxu0 0
        %1013 = vmatpush2.bf16.msra.mxu0 0
        %1014 = vmatprep.subr.bf16.mxu0 0
        %1015 = vmatpush2.bf16.msra.mxu0 0
        %1016 = vmatprep.subr.bf16.mxu0 0
        %1017 = vmatpush2.bf16.msra.mxu0 0
        %1018 = vmatprep.subr.bf16.mxu0 0
        %1019 = vmatpush2.bf16.msra.mxu0 0
        %1020 = vmatprep.subr.bf16.mxu0 0
        %1021 = vmatpush2.bf16.msra.mxu0 0
        %1022 = vmatprep.subr.bf16.mxu0 0
        %1023 = vmatpush2.bf16.msra.mxu0 0
        %1024 = vmatprep.mubr.bf16.mxu0 0
        %1025 = vmatmul.mubr.bf16.gmra.mxu0 %v981
        %v1026 = vpop.f32.mrf.mxu0
        %v1027 = vadd.f32 0.0, %v1026
        %v1028 = vpop.f32.mrf.mxu0
        %v1029 = vadd.f32 0.0, %v1028
        %v1030 = vpop.f32.mrf.mxu0
        %v1031 = vpop.f32.mrf.mxu0
        %1032 = vdwg.mxu0
        %1033 = vmatprep.subr.bf16.mxu0 0
        %1034 = vmatpush1.bf16.msra.mxu0 0
        %1035 = vmatprep.subr.bf16.mxu0 0
        %1036 = vmatpush1.bf16.msra.mxu0 0
        %1037 = vmatprep.subr.bf16.mxu0 0
        %1038 = vmatpush1.bf16.msra.mxu0 0
        %1039 = vmatprep.subr.bf16.mxu0 0
        %1040 = vmatpush1.bf16.msra.mxu0 0
        %1041 = vmatprep.subr.bf16.mxu0 0
        %1042 = vmatpush1.bf16.msra.mxu0 0
        %1043 = vmatprep.subr.bf16.mxu0 0
        %1044 = vmatpush1.bf16.msra.mxu0 0
        %1045 = vmatprep.subr.bf16.mxu0 0
        %1046 = vmatpush1.bf16.msra.mxu0 0
        %1047 = vmatprep.subr.bf16.mxu0 0
        %1048 = vmatpush1.bf16.msra.mxu0 %v990
        %1049 = vmatprep.subr.bf16.mxu0 0
        %1050 = vmatpush2.bf16.msra.mxu0 0
        %1051 = vmatprep.subr.bf16.mxu0 0
        %1052 = vmatpush2.bf16.msra.mxu0 0
        %1053 = vmatprep.subr.bf16.mxu0 0
        %1054 = vmatpush2.bf16.msra.mxu0 0
        %1055 = vmatprep.subr.bf16.mxu0 0
        %1056 = vmatpush2.bf16.msra.mxu0 0
        %1057 = vmatprep.subr.bf16.mxu0 0
        %1058 = vmatpush2.bf16.msra.mxu0 0
        %1059 = vmatprep.subr.bf16.mxu0 0
        %1060 = vmatpush2.bf16.msra.mxu0 0
        %1061 = vmatprep.subr.bf16.mxu0 0
        %1062 = vmatpush2.bf16.msra.mxu0 0
        %1063 = vmatprep.subr.bf16.mxu0 0
        %1064 = vmatpush2.bf16.msra.mxu0 0
        %1065 = vmatprep.mubr.bf16.mxu0 0
        %1066 = vmatmul.mubr.bf16.gmra.mxu0 %v981
        %v1067 = vpop.f32.mrf.mxu0
        %v1068 = vadd.f32 0.0, %v1067
        %v1069 = vpop.f32.mrf.mxu0
        %v1070 = vpop.f32.mrf.mxu0
        %v1071 = vpop.f32.mrf.mxu0
        %1072 = vdwg.mxu0
        %v1073 = vadd.f32 %v941, %v1027
        %v1074 = vadd.f32 %v942, %v1029
        %v1075 = vadd.f32 %v943, %v1068
        %v1076 = vld [vmem:[%s262] sm:$0x7]
        %s1077 = scalar_lea.vmem %s271, 24
        %v1078 = vld [vmem:[%s1077] sm:$0xf]
        %v1081 = vunpack.c.l.s4 1966171168
        %v1082 = vunpack.c.0.s8 %v1081
        %v1083 = vlaneseq
        %v1084 = vshrl.u32 %v1083, 7
        %v1085 = vsub.s32 %v1082, %v1084
        %v1086 = vrot.slane %v1076, %v1085
        %v1087 = vcombine.high %v1086, %v1086
        %v1089 = vunpack.c.l.s4 1966171168
        %v1090 = vunpack.c.0.s8 %v1089
        %v1091 = vlaneseq
        %v1092 = vshrl.u32 %v1091, 7
        %v1093 = vsub.s32 %v1090, %v1092
        %v1094 = vrot.slane %v1086, %v1093
        %v1096 = vunpack.c.l.s4 1966171168
        %v1097 = vunpack.c.0.s8 %v1096
        %v1098 = vlaneseq
        %v1099 = vshrl.u32 %v1098, 7
        %v1100 = vsub.s32 %v1097, %v1099
        %v1101 = vrot.slane %v1087, %v1100
        %v1102 = vcombine.high %v1094, %v1094
        %1103 = vrot.lane.b32.xlu0 %v1094, 92
        %v1104 = vpop.permute.xlu0 %1103
        %1105 = vrot.lane.b32.xlu0 %v1101, 92
        %v1106 = vpop.permute.xlu0 %1105
        %1107 = vrot.lane.b32.xlu0 %v1102, 92
        %v1108 = vpop.permute.xlu0 %1107
        %vm1109 = vcmask 752640
        %v1110 = vsel %vm1109, %v1104, %v1106
        %v1111 = vsel %vm1109, %v1106, %v1108
        %v1113 = vsel %vm318, %v1078, 0
        %v1116 = vsel %vm322, %v1110, 0
        %v1119 = vsel %vm322, %v1111, 0
        %v1122 = vsel %vm322, %v1108, 0
        %1124 = vmatprep.subr.bf16.mxu0 0
        %1125 = vmatpush1.bf16.msra.mxu0 0
        %1126 = vmatprep.subr.bf16.mxu0 0
        %1127 = vmatpush1.bf16.msra.mxu0 0
        %1128 = vmatprep.subr.bf16.mxu0 0
        %1129 = vmatpush1.bf16.msra.mxu0 0
        %1130 = vmatprep.subr.bf16.mxu0 0
        %1131 = vmatpush1.bf16.msra.mxu0 0
        %1132 = vmatprep.subr.bf16.mxu0 0
        %1133 = vmatpush1.bf16.msra.mxu0 0
        %1134 = vmatprep.subr.bf16.mxu0 0
        %1135 = vmatpush1.bf16.msra.mxu0 0
        %1136 = vmatprep.subr.bf16.mxu0 0
        %1137 = vmatpush1.bf16.msra.mxu0 0
        %1138 = vmatprep.subr.bf16.mxu0 %v1119
        %1139 = vmatpush1.bf16.msra.mxu0 %v1116
        %1140 = vmatprep.subr.bf16.mxu0 0
        %1141 = vmatpush2.bf16.msra.mxu0 0
        %1142 = vmatprep.subr.bf16.mxu0 0
        %1143 = vmatpush2.bf16.msra.mxu0 0
        %1144 = vmatprep.subr.bf16.mxu0 0
        %1145 = vmatpush2.bf16.msra.mxu0 0
        %1146 = vmatprep.subr.bf16.mxu0 0
        %1147 = vmatpush2.bf16.msra.mxu0 0
        %1148 = vmatprep.subr.bf16.mxu0 0
        %1149 = vmatpush2.bf16.msra.mxu0 0
        %1150 = vmatprep.subr.bf16.mxu0 0
        %1151 = vmatpush2.bf16.msra.mxu0 0
        %1152 = vmatprep.subr.bf16.mxu0 0
        %1153 = vmatpush2.bf16.msra.mxu0 0
        %1154 = vmatprep.subr.bf16.mxu0 0
        %1155 = vmatpush2.bf16.msra.mxu0 0
        %1156 = vmatprep.mubr.bf16.mxu0 0
        %1157 = vmatmul.mubr.bf16.gmra.mxu0 %v1113
        %v1158 = vpop.f32.mrf.mxu0
        %v1159 = vadd.f32 0.0, %v1158
        %v1160 = vpop.f32.mrf.mxu0
        %v1161 = vadd.f32 0.0, %v1160
        %v1162 = vpop.f32.mrf.mxu0
        %v1163 = vpop.f32.mrf.mxu0
        %1164 = vdwg.mxu0
        %1165 = vmatprep.subr.bf16.mxu0 0
        %1166 = vmatpush1.bf16.msra.mxu0 0
        %1167 = vmatprep.subr.bf16.mxu0 0
        %1168 = vmatpush1.bf16.msra.mxu0 0
        %1169 = vmatprep.subr.bf16.mxu0 0
        %1170 = vmatpush1.bf16.msra.mxu0 0
        %1171 = vmatprep.subr.bf16.mxu0 0
        %1172 = vmatpush1.bf16.msra.mxu0 0
        %1173 = vmatprep.subr.bf16.mxu0 0
        %1174 = vmatpush1.bf16.msra.mxu0 0
        %1175 = vmatprep.subr.bf16.mxu0 0
        %1176 = vmatpush1.bf16.msra.mxu0 0
        %1177 = vmatprep.subr.bf16.mxu0 0
        %1178 = vmatpush1.bf16.msra.mxu0 0
        %1179 = vmatprep.subr.bf16.mxu0 0
        %1180 = vmatpush1.bf16.msra.mxu0 %v1122
        %1181 = vmatprep.subr.bf16.mxu0 0
        %1182 = vmatpush2.bf16.msra.mxu0 0
        %1183 = vmatprep.subr.bf16.mxu0 0
        %1184 = vmatpush2.bf16.msra.mxu0 0
        %1185 = vmatprep.subr.bf16.mxu0 0
        %1186 = vmatpush2.bf16.msra.mxu0 0
        %1187 = vmatprep.subr.bf16.mxu0 0
        %1188 = vmatpush2.bf16.msra.mxu0 0
        %1189 = vmatprep.subr.bf16.mxu0 0
        %1190 = vmatpush2.bf16.msra.mxu0 0
        %1191 = vmatprep.subr.bf16.mxu0 0
        %1192 = vmatpush2.bf16.msra.mxu0 0
        %1193 = vmatprep.subr.bf16.mxu0 0
        %1194 = vmatpush2.bf16.msra.mxu0 0
        %1195 = vmatprep.subr.bf16.mxu0 0
        %1196 = vmatpush2.bf16.msra.mxu0 0
        %1197 = vmatprep.mubr.bf16.mxu0 0
        %1198 = vmatmul.mubr.bf16.gmra.mxu0 %v1113
        %v1199 = vpop.f32.mrf.mxu0
        %v1200 = vadd.f32 0.0, %v1199
        %v1201 = vpop.f32.mrf.mxu0
        %v1202 = vpop.f32.mrf.mxu0
        %v1203 = vpop.f32.mrf.mxu0
        %1204 = vdwg.mxu0
        %v1205 = vadd.f32 %v1073, %v1159
        %v1206 = vadd.f32 %v1074, %v1161
        %v1207 = vadd.f32 %v1075, %v1200
        %v1208 = vld [vmem:[%s262] sm:$0x7]
        %s1209 = scalar_lea.vmem %s271, 28
        %v1210 = vld [vmem:[%s1209] sm:$0xf]
        %v1213 = vunpack.c.l.s4 1966171168
        %v1214 = vunpack.c.0.s8 %v1213
        %v1215 = vlaneseq
        %v1216 = vshrl.u32 %v1215, 7
        %v1217 = vsub.s32 %v1214, %v1216
        %v1218 = vrot.slane %v1208, %v1217
        %v1219 = vcombine.high %v1218, %v1218
        %v1221 = vunpack.c.l.s4 1966171168
        %v1222 = vunpack.c.0.s8 %v1221
        %v1223 = vlaneseq
        %v1224 = vshrl.u32 %v1223, 7
        %v1225 = vsub.s32 %v1222, %v1224
        %v1226 = vrot.slane %v1218, %v1225
        %v1228 = vunpack.c.l.s4 1966171168
        %v1229 = vunpack.c.0.s8 %v1228
        %v1230 = vlaneseq
        %v1231 = vshrl.u32 %v1230, 7
        %v1232 = vsub.s32 %v1229, %v1231
        %v1233 = vrot.slane %v1219, %v1232
        %v1234 = vcombine.high %v1226, %v1226
        %1235 = vrot.lane.b32.xlu0 %v1226, 91
        %v1236 = vpop.permute.xlu0 %1235
        %1237 = vrot.lane.b32.xlu0 %v1233, 91
        %v1238 = vpop.permute.xlu0 %1237
        %1239 = vrot.lane.b32.xlu0 %v1234, 91
        %v1240 = vpop.permute.xlu0 %1239
        %vm1241 = vcmask 744448
        %v1242 = vsel %vm1241, %v1236, %v1238
        %v1243 = vsel %vm1241, %v1238, %v1240
        %v1245 = vsel %vm318, %v1210, 0
        %v1248 = vsel %vm322, %v1242, 0
        %v1251 = vsel %vm322, %v1243, 0
        %v1254 = vsel %vm322, %v1240, 0
        %1256 = vmatprep.subr.bf16.mxu0 0
        %1257 = vmatpush1.bf16.msra.mxu0 0
        %1258 = vmatprep.subr.bf16.mxu0 0
        %1259 = vmatpush1.bf16.msra.mxu0 0
        %1260 = vmatprep.subr.bf16.mxu0 0
        %1261 = vmatpush1.bf16.msra.mxu0 0
        %1262 = vmatprep.subr.bf16.mxu0 0
        %1263 = vmatpush1.bf16.msra.mxu0 0
        %1264 = vmatprep.subr.bf16.mxu0 0
        %1265 = vmatpush1.bf16.msra.mxu0 0
        %1266 = vmatprep.subr.bf16.mxu0 0
        %1267 = vmatpush1.bf16.msra.mxu0 0
        %1268 = vmatprep.subr.bf16.mxu0 0
        %1269 = vmatpush1.bf16.msra.mxu0 0
        %1270 = vmatprep.subr.bf16.mxu0 %v1251
        %1271 = vmatpush1.bf16.msra.mxu0 %v1248
        %1272 = vmatprep.subr.bf16.mxu0 0
        %1273 = vmatpush2.bf16.msra.mxu0 0
        %1274 = vmatprep.subr.bf16.mxu0 0
        %1275 = vmatpush2.bf16.msra.mxu0 0
        %1276 = vmatprep.subr.bf16.mxu0 0
        %1277 = vmatpush2.bf16.msra.mxu0 0
        %1278 = vmatprep.subr.bf16.mxu0 0
        %1279 = vmatpush2.bf16.msra.mxu0 0
        %1280 = vmatprep.subr.bf16.mxu0 0
        %1281 = vmatpush2.bf16.msra.mxu0 0
        %1282 = vmatprep.subr.bf16.mxu0 0
        %1283 = vmatpush2.bf16.msra.mxu0 0
        %1284 = vmatprep.subr.bf16.mxu0 0
        %1285 = vmatpush2.bf16.msra.mxu0 0
        %1286 = vmatprep.subr.bf16.mxu0 0
        %1287 = vmatpush2.bf16.msra.mxu0 0
        %1288 = vmatprep.mubr.bf16.mxu0 0
        %1289 = vmatmul.mubr.bf16.gmra.mxu0 %v1245
        %v1290 = vpop.f32.mrf.mxu0
        %v1291 = vadd.f32 0.0, %v1290
        %v1292 = vpop.f32.mrf.mxu0
        %v1293 = vadd.f32 0.0, %v1292
        %v1294 = vpop.f32.mrf.mxu0
        %v1295 = vpop.f32.mrf.mxu0
        %1296 = vdwg.mxu0
        %1297 = vmatprep.subr.bf16.mxu0 0
        %1298 = vmatpush1.bf16.msra.mxu0 0
        %1299 = vmatprep.subr.bf16.mxu0 0
        %1300 = vmatpush1.bf16.msra.mxu0 0
        %1301 = vmatprep.subr.bf16.mxu0 0
        %1302 = vmatpush1.bf16.msra.mxu0 0
        %1303 = vmatprep.subr.bf16.mxu0 0
        %1304 = vmatpush1.bf16.msra.mxu0 0
        %1305 = vmatprep.subr.bf16.mxu0 0
        %1306 = vmatpush1.bf16.msra.mxu0 0
        %1307 = vmatprep.subr.bf16.mxu0 0
        %1308 = vmatpush1.bf16.msra.mxu0 0
        %1309 = vmatprep.subr.bf16.mxu0 0
        %1310 = vmatpush1.bf16.msra.mxu0 0
        %1311 = vmatprep.subr.bf16.mxu0 0
        %1312 = vmatpush1.bf16.msra.mxu0 %v1254
        %1313 = vmatprep.subr.bf16.mxu0 0
        %1314 = vmatpush2.bf16.msra.mxu0 0
        %1315 = vmatprep.subr.bf16.mxu0 0
        %1316 = vmatpush2.bf16.msra.mxu0 0
        %1317 = vmatprep.subr.bf16.mxu0 0
        %1318 = vmatpush2.bf16.msra.mxu0 0
        %1319 = vmatprep.subr.bf16.mxu0 0
        %1320 = vmatpush2.bf16.msra.mxu0 0
        %1321 = vmatprep.subr.bf16.mxu0 0
        %1322 = vmatpush2.bf16.msra.mxu0 0
        %1323 = vmatprep.subr.bf16.mxu0 0
        %1324 = vmatpush2.bf16.msra.mxu0 0
        %1325 = vmatprep.subr.bf16.mxu0 0
        %1326 = vmatpush2.bf16.msra.mxu0 0
        %1327 = vmatprep.subr.bf16.mxu0 0
        %1328 = vmatpush2.bf16.msra.mxu0 0
        %1329 = vmatprep.mubr.bf16.mxu0 0
        %1330 = vmatmul.mubr.bf16.gmra.mxu0 %v1245
        %v1331 = vpop.f32.mrf.mxu0
        %v1332 = vadd.f32 0.0, %v1331
        %v1333 = vpop.f32.mrf.mxu0
        %v1334 = vpop.f32.mrf.mxu0
        %v1335 = vpop.f32.mrf.mxu0
        %1336 = vdwg.mxu0
        %v1337 = vadd.f32 %v1205, %v1291
        %v1338 = vadd.f32 %v1206, %v1293
        %v1339 = vadd.f32 %v1207, %v1332
        %v1340 = vld [vmem:[%s262] sm:$0x7]
        %s1341 = scalar_lea.vmem %s271, 32
        %v1342 = vld [vmem:[%s1341] sm:$0xf]
        %v1345 = vunpack.c.l.s4 1966171168
        %v1346 = vunpack.c.0.s8 %v1345
        %v1347 = vlaneseq
        %v1348 = vshrl.u32 %v1347, 7
        %v1349 = vsub.s32 %v1346, %v1348
        %v1350 = vrot.slane %v1340, %v1349
        %v1351 = vcombine.high %v1350, %v1350
        %v1353 = vunpack.c.l.s4 1966171168
        %v1354 = vunpack.c.0.s8 %v1353
        %v1355 = vlaneseq
        %v1356 = vshrl.u32 %v1355, 7
        %v1357 = vsub.s32 %v1354, %v1356
        %v1358 = vrot.slane %v1350, %v1357
        %v1360 = vunpack.c.l.s4 1966171168
        %v1361 = vunpack.c.0.s8 %v1360
        %v1362 = vlaneseq
        %v1363 = vshrl.u32 %v1362, 7
        %v1364 = vsub.s32 %v1361, %v1363
        %v1365 = vrot.slane %v1351, %v1364
        %v1366 = vcombine.high %v1358, %v1358
        %1367 = vrot.lane.b32.xlu0 %v1358, 90
        %v1368 = vpop.permute.xlu0 %1367
        %1369 = vrot.lane.b32.xlu0 %v1365, 90
        %v1370 = vpop.permute.xlu0 %1369
        %1371 = vrot.lane.b32.xlu0 %v1366, 90
        %v1372 = vpop.permute.xlu0 %1371
        %vm1373 = vcmask 736256
        %v1374 = vsel %vm1373, %v1368, %v1370
        %v1375 = vsel %vm1373, %v1370, %v1372
        %v1377 = vsel %vm318, %v1342, 0
        %v1380 = vsel %vm322, %v1374, 0
        %v1383 = vsel %vm322, %v1375, 0
        %v1386 = vsel %vm322, %v1372, 0
        %1388 = vmatprep.subr.bf16.mxu0 0
        %1389 = vmatpush1.bf16.msra.mxu0 0
        %1390 = vmatprep.subr.bf16.mxu0 0
        %1391 = vmatpush1.bf16.msra.mxu0 0
        %1392 = vmatprep.subr.bf16.mxu0 0
        %1393 = vmatpush1.bf16.msra.mxu0 0
        %1394 = vmatprep.subr.bf16.mxu0 0
        %1395 = vmatpush1.bf16.msra.mxu0 0
        %1396 = vmatprep.subr.bf16.mxu0 0
        %1397 = vmatpush1.bf16.msra.mxu0 0
        %1398 = vmatprep.subr.bf16.mxu0 0
        %1399 = vmatpush1.bf16.msra.mxu0 0
        %1400 = vmatprep.subr.bf16.mxu0 0
        %1401 = vmatpush1.bf16.msra.mxu0 0
        %1402 = vmatprep.subr.bf16.mxu0 %v1383
        %1403 = vmatpush1.bf16.msra.mxu0 %v1380
        %1404 = vmatprep.subr.bf16.mxu0 0
        %1405 = vmatpush2.bf16.msra.mxu0 0
        %1406 = vmatprep.subr.bf16.mxu0 0
        %1407 = vmatpush2.bf16.msra.mxu0 0
        %1408 = vmatprep.subr.bf16.mxu0 0
        %1409 = vmatpush2.bf16.msra.mxu0 0
        %1410 = vmatprep.subr.bf16.mxu0 0
        %1411 = vmatpush2.bf16.msra.mxu0 0
        %1412 = vmatprep.subr.bf16.mxu0 0
        %1413 = vmatpush2.bf16.msra.mxu0 0
        %1414 = vmatprep.subr.bf16.mxu0 0
        %1415 = vmatpush2.bf16.msra.mxu0 0
        %1416 = vmatprep.subr.bf16.mxu0 0
        %1417 = vmatpush2.bf16.msra.mxu0 0
        %1418 = vmatprep.subr.bf16.mxu0 0
        %1419 = vmatpush2.bf16.msra.mxu0 0
        %1420 = vmatprep.mubr.bf16.mxu0 0
        %1421 = vmatmul.mubr.bf16.gmra.mxu0 %v1377
        %v1422 = vpop.f32.mrf.mxu0
        %v1423 = vadd.f32 0.0, %v1422
        %v1424 = vpop.f32.mrf.mxu0
        %v1425 = vadd.f32 0.0, %v1424
        %v1426 = vpop.f32.mrf.mxu0
        %v1427 = vpop.f32.mrf.mxu0
        %1428 = vdwg.mxu0
        %1429 = vmatprep.subr.bf16.mxu0 0
        %1430 = vmatpush1.bf16.msra.mxu0 0
        %1431 = vmatprep.subr.bf16.mxu0 0
        %1432 = vmatpush1.bf16.msra.mxu0 0
        %1433 = vmatprep.subr.bf16.mxu0 0
        %1434 = vmatpush1.bf16.msra.mxu0 0
        %1435 = vmatprep.subr.bf16.mxu0 0
        %1436 = vmatpush1.bf16.msra.mxu0 0
        %1437 = vmatprep.subr.bf16.mxu0 0
        %1438 = vmatpush1.bf16.msra.mxu0 0
        %1439 = vmatprep.subr.bf16.mxu0 0
        %1440 = vmatpush1.bf16.msra.mxu0 0
        %1441 = vmatprep.subr.bf16.mxu0 0
        %1442 = vmatpush1.bf16.msra.mxu0 0
        %1443 = vmatprep.subr.bf16.mxu0 0
        %1444 = vmatpush1.bf16.msra.mxu0 %v1386
        %1445 = vmatprep.subr.bf16.mxu0 0
        %1446 = vmatpush2.bf16.msra.mxu0 0
        %1447 = vmatprep.subr.bf16.mxu0 0
        %1448 = vmatpush2.bf16.msra.mxu0 0
        %1449 = vmatprep.subr.bf16.mxu0 0
        %1450 = vmatpush2.bf16.msra.mxu0 0
        %1451 = vmatprep.subr.bf16.mxu0 0
        %1452 = vmatpush2.bf16.msra.mxu0 0
        %1453 = vmatprep.subr.bf16.mxu0 0
        %1454 = vmatpush2.bf16.msra.mxu0 0
        %1455 = vmatprep.subr.bf16.mxu0 0
        %1456 = vmatpush2.bf16.msra.mxu0 0
        %1457 = vmatprep.subr.bf16.mxu0 0
        %1458 = vmatpush2.bf16.msra.mxu0 0
        %1459 = vmatprep.subr.bf16.mxu0 0
        %1460 = vmatpush2.bf16.msra.mxu0 0
        %1461 = vmatprep.mubr.bf16.mxu0 0
        %1462 = vmatmul.mubr.bf16.gmra.mxu0 %v1377
        %v1463 = vpop.f32.mrf.mxu0
        %v1464 = vadd.f32 0.0, %v1463
        %v1465 = vpop.f32.mrf.mxu0
        %v1466 = vpop.f32.mrf.mxu0
        %v1467 = vpop.f32.mrf.mxu0
        %1468 = vdwg.mxu0
        %v1469 = vadd.f32 %v1337, %v1423
        %v1470 = vadd.f32 %v1338, %v1425
        %v1471 = vadd.f32 %v1339, %v1464
        %1472 = vst [vmem:[#allocation2] sm:$0xff] %v1469
        %1473 = vst [vmem:[#allocation2 + $0x8] sm:$0xff] %v1470
        %vm1474 = vcmask 261120
        %1475 = vst.msk [vmem:[#allocation2 + $0x10] sm:$0xff] %vm1474, %v1471
        // Predicated region
        $region37: #{tpu_custom_call.1} parent=31 // pred_check
          %p1476 = pneg %p281
        $region38: #{tpu_custom_call.1} parent=31 // pred_check_branch
          %1478 = sbr.rel (%p1476) target = $region40
        $region39: #{tpu_custom_call.1} parent=31 // pred_region
          %v1479 = vld [vmem:[#allocation2] sm:$0xff]
          %v1480 = vld [vmem:[#allocation2 + $0x8] sm:$0xff]
          %v1481 = vld [vmem:[#allocation2 + $0x10] sm:$0xff]
          %v1482 = vld [vmem:[%s279] sm:$0xff]
          %1484 = vset.pattern.permute.xlu0 0
          %1485 = vperm.xlu0 %1484, %v1482
          %v1486 = vpop.permute.xlu0 %1485
          %v1488 = vadd.f32 %v1479, %v1486
          %v1489 = vadd.f32 %v1480, %v1486
          %v1490 = vadd.f32 %v1481, %v1486
          %1491 = vst [vmem:[%s250] sm:$0xff] %v1488
          %1492 = vst [vmem:[%s250 + $0x8] sm:$0xff] %v1489
          %1493 = vst.msk [vmem:[%s250 + $0x10] sm:$0xff] %vm1474, %v1490
        $region40: #{tpu_custom_call.1} parent=31 // pred_fallthru
          _
        %s1494 = sand.u32 %s132, 1
        %s1495 = scalar_lea.sflag [#allocation4], %s1494
        %s1496 = sand.u32 %s132, 1
        %s1497 = smul.addr %s1496, 24
        %s1498 = scalar_lea.vmem [#allocation3], %s1497
        // Predicated region
        $region41: #{tpu_custom_call.1} parent=31 // pred_check
          %p1499 = pneg %p142
        $region42: #{tpu_custom_call.1} parent=31 // pred_check_branch
          %1501 = sbr.rel (%p1499) target = $region44
        $region43: #{tpu_custom_call.1} parent=31 // pred_region
          %s1503 = ssub.s32 384, 384
          %1504 = vsyncadd %s1495, %s1503
          %s1505 = smul.addr %s22, 3
          %s1506 = smul.addr %s23, 6
          %s1507 = sadd.s32 %s1505, %s1506
          %s1508 = smul.addr %s1507, 128
          %s1509 = scalar_lea.hbm %s3, %s1508
          %s1511 = sshll.u32 %s1498, 4
          %s1512 = int_to_ptr.vmem [resolvable:$true] %s1511
          %1514 = dma.vmem_to_hbm [thread:$0]  %s1512, 384, %s1509, %s1495
        $region44: #{tpu_custom_call.1} parent=31 // pred_fallthru
          _
      $region32: #{tpu_custom_call.1} parent=5 // pred_fallthru
        _
      %p1515 = scmp.le.s32.totalorder 2, %s12
      // Predicated region
      $region45: #{tpu_custom_call.1} parent=5 // pred_check
        %p1516 = pneg %p1515
      $region46: #{tpu_custom_call.1} parent=5 // pred_check_branch
        %1518 = sbr.rel (%p1516) target = $region48
      $region47: #{tpu_custom_call.1} parent=5 // pred_region
        %s1519 = ssub.s32 %s12, 2
        // Predicated region
        $region49: #{tpu_custom_call.1} parent=47 // pred_check
          %p1520 = pneg %p148
        $region50: #{tpu_custom_call.1} parent=47 // pred_check_branch
          %1522 = sbr.rel (%p1520) target = $region52
        $region51: #{tpu_custom_call.1} parent=47 // pred_region
          %s1523 = sand.u32 %s133, 1
          %s1524 = scalar_lea.sflag [#allocation4], %s1523
          %s1525 = sand.u32 %s133, 1
          %s1526 = smul.addr %s1525, 24
          %s1527 = scalar_lea.vmem [#allocation3], %s1526
          %1528 = dma.done %s1524, 384
        $region52: #{tpu_custom_call.1} parent=47 // pred_fallthru
          _
      $region48: #{tpu_custom_call.1} parent=5 // pred_fallthru
        _
    $region6: #{tpu_custom_call.1} parent=1 // loop_footer
      %s16 = sadd.s32 1, %s12
    $region7: #{tpu_custom_call.1} parent=1 // loop_footer_branch
      %11 = sbr.rel target = $region3
    $region8: #{tpu_custom_call.1} parent=1 // loop_exit
      _
    %1529 = vsyncpa [#allocation4], 1
    %s1530 = scalar_lea.sflag [#allocation4], 1
    %1531 = vsyncpa %s1530, 1

</llo_original>
